<compile_context>
chip_gen: v7x
topology: tpu7x:2x2x1
jax: 0.10.0
libtpu: 0.0.40
codegen_flags: <defaults>
</compile_context>

<pallas_src>
import functools

import jax
import jax.numpy as jnp
import numpy as np
from jax import lax
from jax.experimental import pallas as pl
from jax.experimental.pallas import tpu as pltpu


def _layernorm(x, gamma, beta, eps):
    """Fused one-pass LayerNorm: E[x] and E[x^2] accumulated together."""
    h = x.shape[-1]
    inv_h = 1.0 / h
    s1 = jnp.sum(x, axis=-1, keepdims=True)
    s2 = jnp.sum(x * x, axis=-1, keepdims=True)
    mean = s1 * inv_h
    var = jnp.maximum(s2 * inv_h - mean * mean, 0.0)
    return (x - mean) * lax.rsqrt(var + eps) * gamma + beta


def _token_type_select(tt, tok_tab_f32, rows, hidden):
    """Tiny-table lookup via per-row vector selects (type_vocab_size is small).

    NOTE: ids >= type_vocab_size silently map to type 0 (PyTorch would raise).
    """
    emb = jnp.broadcast_to(tok_tab_f32[0:1, :], (rows, hidden))
    for v in range(1, tok_tab_f32.shape[0]):
        emb = jnp.where(tt == v, tok_tab_f32[v:v + 1, :], emb)
    return emb


# ----------------------------------------------------------------------------
# Kernel 1: small vocab — word table fully VMEM-resident, gather via one-hot
# matmul on the MXU (no per-row DMAs, no semaphores).
# ----------------------------------------------------------------------------
def _bert_emb_resident_kernel(ids_ref, tt_ref, pos_ref, word_ref, tok_ref,
                              gamma_ref, beta_ref, out_ref, *, eps):
    tq, hidden = out_ref.shape
    vocab = word_ref.shape[0]

    ids = ids_ref[...]                                          # (tq, 1) int32
    onehot = (ids == lax.broadcasted_iota(jnp.int32, (tq, vocab), 1))
    onehot = onehot.astype(word_ref.dtype)
    word_emb = jnp.dot(onehot, word_ref[...],
                       preferred_element_type=jnp.float32,
                       precision=lax.Precision.HIGHEST)          # (tq, H) f32

    pos_emb = pos_ref[...].astype(jnp.float32)                   # (tq, H)
    tok_emb = _token_type_select(tt_ref[...],
                                 tok_ref[...].astype(jnp.float32),
                                 tq, hidden)

    x = word_emb + pos_emb + tok_emb
    y = _layernorm(x, gamma_ref[...].astype(jnp.float32),
                   beta_ref[...].astype(jnp.float32), eps)
    out_ref[...] = y.astype(out_ref.dtype)


# ----------------------------------------------------------------------------
# Kernel 2: large vocab — word rows gathered from HBM with manual DMAs driven
# by scalar-prefetched ids; double-buffered sub-tiles, one aggregate semaphore
# wait per sub-tile.
# ----------------------------------------------------------------------------
def _bert_emb_gather_kernel(ids_ref, tt_ref, pos_ref, tok_ref, gamma_ref,
                            beta_ref, word_hbm, out_ref, wbuf, sem,
                            *, tq, sub, eps):
    base = pl.program_id(0) * tq
    hidden = out_ref.shape[-1]
    n_sub = tq // sub

    def issue(s, slot):
        # Start the `sub` word-row gathers of sub-tile `s` into buffer `slot`;
        # all of them signal the same per-slot DMA semaphore.
        def body(j, carry):
            wid = ids_ref[base + s * sub + j]
            pltpu.make_async_copy(word_hbm.at[wid], wbuf.at[slot, j],
                                  sem.at[slot]).start()
            return carry
        lax.fori_loop(0, sub, body, 0, unroll=8)

    def wait(slot):
        # DMA semaphores count bytes: one wait with a (sub, H)-sized stand-in
        # descriptor covers all `sub` row copies of this slot.
        pltpu.make_async_copy(word_hbm.at[pl.ds(0, sub)], wbuf.at[slot],
                              sem.at[slot]).wait()

    # Prime sub-tile 0, then do all gather-independent work so descriptor
    # issue / DMA latency overlap it.
    issue(0, 0)
    tok_emb = _token_type_select(tt_ref[...],
                                 tok_ref[...].astype(jnp.float32),
                                 tq, hidden)
    gamma = gamma_ref[...].astype(jnp.float32)
    beta = beta_ref[...].astype(jnp.float32)

    # Static sub-tile schedule: wait slot s, prefetch sub-tile s+1 into the
    # other slot, then sum + LayerNorm + store sub-tile s.  Each grid step is
    # self-contained, so the grid axis stays megacore-safe "parallel".
    for s in range(n_sub):
        slot = s & 1
        wait(slot)
        if s + 1 < n_sub:
            issue(s + 1, 1 - slot)
        lo = s * sub
        x = (wbuf[slot].astype(jnp.float32)
             + pos_ref[lo:lo + sub, :].astype(jnp.float32)
             + tok_emb[lo:lo + sub, :])
        out_ref[lo:lo + sub, :] = _layernorm(x, gamma, beta,
                                             eps).astype(out_ref.dtype)


def _maybe_single_buffered(block_shape, index_map):
    """Constant-index blocks don't need double buffering; degrade gracefully
    if this JAX version lacks pipeline_mode / pl.Buffered."""
    if hasattr(pl, "Buffered"):
        try:
            return pl.BlockSpec(block_shape, index_map,
                                pipeline_mode=pl.Buffered(1))
        except TypeError:
            pass
    return pl.BlockSpec(block_shape, index_map)


def bert_embeddings(input_ids, token_type_ids, word_tab, pos_tab, tok_tab,
                    gamma, beta, *, eps=1e-12, tq=128, sub_tile=64,
                    out_dtype=jnp.float32, force_gather=False,
                    resident_vocab_limit=2048):
    """BertEmbeddings forward: word + position + token_type, sum, LayerNorm."""
    B, T = input_ids.shape
    V, H = word_tab.shape
    V_tok = tok_tab.shape[0]
    P = pos_tab.shape[0]
    assert P >= T, "need max_position_embeddings >= seq_len"
    assert tq % 8 == 0, "token tile must be a multiple of 8 (sublane)"
    assert (T % tq == 0) or (tq % T == 0), \
        "tile must nest with seq_len so per-tile positions form one (tq,H) block"

    if token_type_ids is None:
        token_type_ids = jnp.zeros_like(input_ids)

    n_tokens = B * T
    n_pad = (-n_tokens) % tq            # 0 whenever T % tq == 0
    n_total = n_tokens + n_pad
    n_tiles = n_total // tq

    # Padded tail tokens (id 0, type 0) run through the kernel and are sliced
    # off below — wasted work only on the last tile of small batches.
    ids_flat = jnp.pad(input_ids.reshape(-1).astype(jnp.int32), (0, n_pad))
    tt_col = jnp.pad(token_type_ids.reshape(-1).astype(jnp.int32),
                     (0, n_pad)).reshape(n_total, 1)
    gamma2d = gamma.reshape(1, H)
    beta2d = beta.reshape(1, H)

    tile_row = lambda i, *_: (i, 0)
    const_idx = lambda i, *_: (0, 0)

    # Position embeddings as one (tq, H) block per tile:
    #   tq <= T : block (i % (T//tq)) of pos_tab[:T]   (needs T % tq == 0)
    #   tq >  T : constant pre-tiled slab              (needs tq % T == 0)
    if tq <= T:
        n_pos_blocks = T // tq
        pos_in = pos_tab[:T]
        pos_spec = pl.BlockSpec((tq, H), lambda i, *_: (i % n_pos_blocks, 0))
    else:
        pos_in = jnp.tile(pos_tab[:T], (tq // T, 1))
        pos_spec = _maybe_single_buffered((tq, H), const_idx)

    tok_spec = _maybe_single_buffered((V_tok, H), const_idx)
    gamma_spec = _maybe_single_buffered((1, H), const_idx)
    beta_spec = _maybe_single_buffered((1, H), const_idx)
    out_spec = pl.BlockSpec((tq, H), tile_row)
    cparams = pltpu.CompilerParams(dimension_semantics=("parallel",))

    use_resident = (not force_gather) and (V <= resident_vocab_limit)

    if use_resident:
        # Small vocab: whole word table lives in VMEM; gather = one-hot @ table
        # on the MXU (no per-row DMAs at all).  Pad vocab rows to a sublane
        # multiple; padded rows are never selected (ids < V).
        v_pad = (-V) % 8
        word_in = jnp.pad(word_tab, ((0, v_pad), (0, 0))) if v_pad else word_tab
        ids_col = ids_flat.reshape(n_total, 1)
        kernel = functools.partial(_bert_emb_resident_kernel, eps=eps)
        out = pl.pallas_call(
            kernel,
            out_shape=jax.ShapeDtypeStruct((n_total, H), out_dtype),
            grid_spec=pltpu.PrefetchScalarGridSpec(
                num_scalar_prefetch=0,
                grid=(n_tiles,),
                in_specs=[
                    pl.BlockSpec((tq, 1), tile_row),               # word ids
                    pl.BlockSpec((tq, 1), tile_row),               # token-type ids
                    pos_spec,
                    _maybe_single_buffered(word_in.shape, const_idx),  # word table
                    tok_spec, gamma_spec, beta_spec,
                ],
                out_specs=out_spec,
            ),
            compiler_params=cparams,
        )(ids_col, tt_col, pos_in, word_in, tok_tab, gamma2d, beta2d)
    else:
        # Large vocab: word table stays in HBM; rows gathered by manual DMA
        # (scalar-prefetched ids), double-buffered per sub-tile, one aggregate
        # semaphore wait per sub-tile.
        sub = min(sub_tile, tq)
        assert tq % sub == 0 and sub % 8 == 0
        kernel = functools.partial(_bert_emb_gather_kernel, tq=tq, sub=sub,
                                   eps=eps)
        out = pl.pallas_call(
            kernel,
            out_shape=jax.ShapeDtypeStruct((n_total, H), out_dtype),
            grid_spec=pltpu.PrefetchScalarGridSpec(
                num_scalar_prefetch=1,                             # word ids -> SMEM
                grid=(n_tiles,),
                in_specs=[
                    pl.BlockSpec((tq, 1), tile_row),               # token-type ids
                    pos_spec,
                    tok_spec, gamma_spec, beta_spec,
                    pl.BlockSpec(memory_space=pl.ANY),             # word table (HBM)
                ],
                out_specs=out_spec,
                scratch_shapes=[
                    pltpu.VMEM((2, sub, H), word_tab.dtype),       # double-buffered rows
                    pltpu.SemaphoreType.DMA((2,)),                 # one sem per slot
                ],
            ),
            compiler_params=cparams,
        )(ids_flat, tt_col, pos_in, tok_tab, gamma2d, beta2d, word_tab)

    return out[:n_tokens].reshape(B, T, H)


def bert_embeddings_ref(input_ids, token_type_ids, word_tab, pos_tab, tok_tab,
                        gamma, beta, eps=1e-12):
    B, T = input_ids.shape
    if token_type_ids is None:
        token_type_ids = jnp.zeros_like(input_ids)
    x = (word_tab[input_ids]
         + tok_tab[token_type_ids]
         + pos_tab[jnp.arange(T)][None, :, :])
    mean = x.mean(-1, keepdims=True)
    var = ((x - mean) ** 2).mean(-1, keepdims=True)
    return (x - mean) / jnp.sqrt(var + eps) * gamma + beta


if __name__ == "__main__":
    # Small, BERT-like config.
    vocab_size = 100
    hidden_size = 128
    max_position_embeddings = 256
    type_vocab_size = 2
    pad_token_id = 0
    layer_norm_eps = 1e-12
    B, T = 2, 256

    key = jax.random.PRNGKey(0)
    k_w, k_p, k_t, k_g, k_b, k_ids, k_tt = jax.random.split(key, 7)

    word_tab = 0.02 * jax.random.normal(k_w, (vocab_size, hidden_size), jnp.float32)
    word_tab = word_tab.at[pad_token_id].set(0.0)   # nn.Embedding padding_idx row
    pos_tab = 0.02 * jax.random.normal(k_p, (max_position_embeddings, hidden_size), jnp.float32)
    tok_tab = 0.02 * jax.random.normal(k_t, (type_vocab_size, hidden_size), jnp.float32)
    gamma = 1.0 + 0.1 * jax.random.normal(k_g, (hidden_size,), jnp.float32)
    beta = 0.1 * jax.random.normal(k_b, (hidden_size,), jnp.float32)

    input_ids = jax.random.randint(k_ids, (B, T), 0, vocab_size, jnp.int32)
    token_type_ids = jax.random.randint(k_tt, (B, T), 0, type_vocab_size, jnp.int32)

    args = (input_ids, token_type_ids, word_tab, pos_tab, tok_tab, gamma, beta)
    ref = bert_embeddings_ref(*args, eps=layer_norm_eps)

    # Path 1 (demo default): small vocab -> VMEM-resident table, one-hot MXU
    # gather.  The MXU evaluates f32 matmuls via bf16 passes, so allow a small
    # tolerance here; the DMA-gather path below is checked tight.
    out_resident = jax.block_until_ready(
        bert_embeddings(*args, eps=layer_norm_eps, tq=128))
    np.testing.assert_allclose(np.asarray(out_resident), np.asarray(ref),
                               atol=2e-3, rtol=2e-3)

    # Path 2: forced large-vocab fallback -> manual HBM row gathers with a
    # single aggregate semaphore wait and double-buffered 64-row sub-tiles
    # (bit-faithful lookup).
    out_gather = jax.block_until_ready(
        bert_embeddings(*args, eps=layer_norm_eps, tq=128, sub_tile=64,
                        force_gather=True))
    np.testing.assert_allclose(np.asarray(out_gather), np.asarray(ref),
                               atol=1e-5, rtol=1e-5)

    print("KERNEL_OK")
</pallas_src>

<mosaic_0001>
module attributes {stable_mosaic.version = 11 : i64} {
  func.func @_bert_emb_resident_kernel(%arg0: i32, %arg1: memref<128x1xi32, #tpu.memory_space<vmem>>, %arg2: memref<128x1xi32, #tpu.memory_space<vmem>>, %arg3: memref<128x128xf32, #tpu.memory_space<vmem>>, %arg4: memref<104x128xf32, #tpu.memory_space<vmem>>, %arg5: memref<2x128xf32, #tpu.memory_space<vmem>>, %arg6: memref<1x128xf32, #tpu.memory_space<vmem>>, %arg7: memref<1x128xf32, #tpu.memory_space<vmem>>, %arg8: memref<128x128xf32, #tpu.memory_space<vmem>>) attributes {dimension_semantics = [#tpu.dimension_semantics<parallel>], iteration_bounds = array<i64: 4>, scalar_prefetch = 0 : i64, scratch_operands = 0 : i64, tpu.core_type = #tpu.core_type<tc>, window_params = [{transform_indices = @transform_0, window_bounds = array<i64: 128, 1>}, {transform_indices = @transform_1, window_bounds = array<i64: 128, 1>}, {transform_indices = @transform_2, window_bounds = array<i64: 128, 128>}, {pipeline_mode = #tpu.pipeline_mode<synchronous>, transform_indices = @transform_3, window_bounds = array<i64: 104, 128>}, {pipeline_mode = #tpu.pipeline_mode<synchronous>, transform_indices = @transform_4, window_bounds = array<i64: 2, 128>}, {pipeline_mode = #tpu.pipeline_mode<synchronous>, transform_indices = @transform_5, window_bounds = array<i64: 1, 128>}, {pipeline_mode = #tpu.pipeline_mode<synchronous>, transform_indices = @transform_6, window_bounds = array<i64: 1, 128>}, {transform_indices = @transform_7, window_bounds = array<i64: 128, 128>}]} {
    %c0 = arith.constant 0 : index
    %c0_0 = arith.constant 0 : index
    %0 = vector.load %arg1[%c0, %c0_0] : memref<128x1xi32, #tpu.memory_space<vmem>>, vector<128x1xi32>
    %1 = tpu.iota {dimensions = array<i32: 1>} : vector<128x104xi32>
    %2 = vector.broadcast %0 : vector<128x1xi32> to vector<128x104xi32>
    %3 = arith.cmpi eq, %2, %1 : vector<128x104xi32>
    %4 = arith.extui %3 : vector<128x104xi1> to vector<128x104xi32>
    %5 = arith.sitofp %4 : vector<128x104xi32> to vector<128x104xf32>
    %c0_1 = arith.constant 0 : index
    %c0_2 = arith.constant 0 : index
    %6 = vector.load %arg4[%c0_1, %c0_2] : memref<104x128xf32, #tpu.memory_space<vmem>>, vector<104x128xf32>
    %cst = arith.constant dense<0.000000e+00> : vector<128x128xf32>
    %7 = tpu.matmul %5, %6, %cst {dimension_numbers = #tpu.dot_dimension_numbers<[1], [0], [0], [1], [0, 0, 1, 1], [], []>, precision = #tpu.contract_precision<fp32>} : vector<128x104xf32>, vector<104x128xf32>, vector<128x128xf32> -> vector<128x128xf32>
    %c0_3 = arith.constant 0 : index
    %c0_4 = arith.constant 0 : index
    %8 = vector.load %arg3[%c0_3, %c0_4] : memref<128x128xf32, #tpu.memory_space<vmem>>, vector<128x128xf32>
    %c0_5 = arith.constant 0 : index
    %c0_6 = arith.constant 0 : index
    %9 = vector.load %arg2[%c0_5, %c0_6] : memref<128x1xi32, #tpu.memory_space<vmem>>, vector<128x1xi32>
    %c0_7 = arith.constant 0 : index
    %c0_8 = arith.constant 0 : index
    %10 = vector.load %arg5[%c0_7, %c0_8] : memref<2x128xf32, #tpu.memory_space<vmem>>, vector<2x128xf32>
    %11 = vector.extract_strided_slice %10 {offsets = [0, 0], sizes = [1, 128], strides = [1, 1]} : vector<2x128xf32> to vector<1x128xf32>
    %12 = vector.shape_cast %11 : vector<1x128xf32> to vector<1x128xf32>
    %13 = vector.broadcast %12 : vector<1x128xf32> to vector<128x128xf32>
    %c1_i32 = arith.constant 1 : i32
    %14 = vector.broadcast %c1_i32 : i32 to vector<128x1xi32>
    %15 = arith.cmpi eq, %9, %14 : vector<128x1xi32>
    %16 = vector.extract_strided_slice %10 {offsets = [1, 0], sizes = [1, 128], strides = [1, 1]} : vector<2x128xf32> to vector<1x128xf32>
    %17 = vector.shape_cast %15 : vector<128x1xi1> to vector<128x1xi1>
    %18 = vector.broadcast %17 : vector<128x1xi1> to vector<128x128xi1>
    %19 = vector.shape_cast %16 : vector<1x128xf32> to vector<1x128xf32>
    %20 = vector.broadcast %19 : vector<1x128xf32> to vector<128x128xf32>
    %21 = arith.select %18, %20, %13 : vector<128x128xi1>, vector<128x128xf32>
    %22 = arith.addf %7, %8 : vector<128x128xf32>
    %23 = arith.addf %22, %21 : vector<128x128xf32>
    %c0_9 = arith.constant 0 : index
    %c0_10 = arith.constant 0 : index
    %24 = vector.load %arg6[%c0_9, %c0_10] : memref<1x128xf32, #tpu.memory_space<vmem>>, vector<1x128xf32>
    %c0_11 = arith.constant 0 : index
    %c0_12 = arith.constant 0 : index
    %25 = vector.load %arg7[%c0_11, %c0_12] : memref<1x128xf32, #tpu.memory_space<vmem>>, vector<1x128xf32>
    %cst_13 = arith.constant dense<0.000000e+00> : vector<128xf32>
    %26 = vector.multi_reduction <add>, %23, %cst_13 [1] : vector<128x128xf32> to vector<128xf32>
    %27 = vector.shape_cast %26 : vector<128xf32> to vector<128x1xf32>
    %28 = arith.mulf %23, %23 : vector<128x128xf32>
    %cst_14 = arith.constant dense<0.000000e+00> : vector<128xf32>
    %29 = vector.multi_reduction <add>, %28, %cst_14 [1] : vector<128x128xf32> to vector<128xf32>
    %30 = vector.shape_cast %29 : vector<128xf32> to vector<128x1xf32>
    %cst_15 = arith.constant 7.812500e-03 : f32
    %31 = vector.broadcast %cst_15 : f32 to vector<128x1xf32>
    %32 = arith.mulf %27, %31 : vector<128x1xf32>
    %cst_16 = arith.constant 7.812500e-03 : f32
    %33 = vector.broadcast %cst_16 : f32 to vector<128x1xf32>
    %34 = arith.mulf %30, %33 : vector<128x1xf32>
    %35 = arith.mulf %32, %32 : vector<128x1xf32>
    %36 = arith.subf %34, %35 : vector<128x1xf32>
    %cst_17 = arith.constant 0.000000e+00 : f32
    %37 = vector.broadcast %cst_17 : f32 to vector<128x1xf32>
    %38 = arith.maximumf %36, %37 : vector<128x1xf32>
    %39 = vector.broadcast %32 : vector<128x1xf32> to vector<128x128xf32>
    %40 = arith.subf %23, %39 : vector<128x128xf32>
    %cst_18 = arith.constant 9.99999996E-13 : f32
    %41 = vector.broadcast %cst_18 : f32 to vector<128x1xf32>
    %42 = arith.addf %38, %41 : vector<128x1xf32>
    %43 = math.rsqrt %42 : vector<128x1xf32>
    %44 = vector.broadcast %43 : vector<128x1xf32> to vector<128x128xf32>
    %45 = arith.mulf %40, %44 : vector<128x128xf32>
    %46 = vector.broadcast %24 : vector<1x128xf32> to vector<128x128xf32>
    %47 = arith.mulf %45, %46 : vector<128x128xf32>
    %48 = vector.broadcast %25 : vector<1x128xf32> to vector<128x128xf32>
    %49 = arith.addf %47, %48 : vector<128x128xf32>
    %c0_19 = arith.constant 0 : index
    %c0_20 = arith.constant 0 : index
    %50 = vector.load %arg8[%c0_19, %c0_20] : memref<128x128xf32, #tpu.memory_space<vmem>>, vector<128x128xf32>
    tpu.vector_store %arg8[%c0_19, %c0_20], %49 {strides = array<i32>} : memref<128x128xf32, #tpu.memory_space<vmem>>, vector<128x128xf32>,
    return
  }
  func.func @transform_0(%arg0: i32) -> (i32, i32) {
    %c0_i32 = arith.constant 0 : i32
    %c0_i32_0 = arith.constant 0 : i32
    return %arg0, %c0_i32 : i32, i32
  }
  func.func @transform_1(%arg0: i32) -> (i32, i32) {
    %c0_i32 = arith.constant 0 : i32
    %c0_i32_0 = arith.constant 0 : i32
    return %arg0, %c0_i32 : i32, i32
  }
  func.func @transform_2(%arg0: i32) -> (i32, i32) {
    %c2_i32 = arith.constant 2 : i32
    %c0_i32 = arith.constant 0 : i32
    %0 = arith.cmpi eq, %c2_i32, %c0_i32 : i32
    %c1_i32 = arith.constant 1 : i32
    %1 = arith.select %0, %c1_i32, %c2_i32 : i32
    %2 = arith.remsi %arg0, %1 : i32
    %c0_i32_0 = arith.constant 0 : i32
    %3 = arith.cmpi ne, %2, %c0_i32_0 : i32
    %c0_i32_1 = arith.constant 0 : i32
    %4 = arith.cmpi slt, %2, %c0_i32_1 : i32
    %c0_i32_2 = arith.constant 0 : i32
    %5 = arith.cmpi slt, %1, %c0_i32_2 : i32
    %6 = arith.xori %4, %5 : i1
    %7 = arith.andi %6, %3 : i1
    %8 = arith.addi %2, %1 : i32
    %9 = arith.select %7, %8, %2 : i32
    %c0_i32_3 = arith.constant 0 : i32
    %c0_i32_4 = arith.constant 0 : i32
    return %9, %c0_i32_3 : i32, i32
  }
  func.func @transform_3(%arg0: i32) -> (i32, i32) {
    %c0_i32 = arith.constant 0 : i32
    %c0_i32_0 = arith.constant 0 : i32
    %c0_i32_1 = arith.constant 0 : i32
    return %c0_i32, %c0_i32_0 : i32, i32
  }
  func.func @transform_4(%arg0: i32) -> (i32, i32) {
    %c0_i32 = arith.constant 0 : i32
    %c0_i32_0 = arith.constant 0 : i32
    %c0_i32_1 = arith.constant 0 : i32
    return %c0_i32, %c0_i32_0 : i32, i32
  }
  func.func @transform_5(%arg0: i32) -> (i32, i32) {
    %c0_i32 = arith.constant 0 : i32
    %c0_i32_0 = arith.constant 0 : i32
    %c0_i32_1 = arith.constant 0 : i32
    return %c0_i32, %c0_i32_0 : i32, i32
  }
  func.func @transform_6(%arg0: i32) -> (i32, i32) {
    %c0_i32 = arith.constant 0 : i32
    %c0_i32_0 = arith.constant 0 : i32
    %c0_i32_1 = arith.constant 0 : i32
    return %c0_i32, %c0_i32_0 : i32, i32
  }
  func.func @transform_7(%arg0: i32) -> (i32, i32) {
    %c0_i32 = arith.constant 0 : i32
    %c0_i32_0 = arith.constant 0 : i32
    return %arg0, %c0_i32 : i32, i32
  }
}

</mosaic_0001>

<llo_original>
// kernel: tpu_custom_call.1
$region0: #{tpu_custom_call.1}
  #allocation0 [shape = 'u32[]', space=smem, size = 0x4, offset = 0x4, fixed_abs, tag = 'smem constant byte address 0x4 - core index']
  #allocation1 [shape = 'u32[144,128]{1,0:T(1,128)}', space=vmem, size = 0x12000, scoped, tag = 'internal scratch']
  %s0 = inlined_call_operand.vmem [shape: s32[512,1], index: 0, kind: input, shape index: {}]
  %s1 = inlined_call_operand.vmem [shape: s32[512,1], index: 1, kind: input, shape index: {}]
  %s2 = inlined_call_operand.vmem [shape: f32[256,128], index: 2, kind: input, shape index: {}]
  %s3 = inlined_call_operand.vmem [shape: f32[104,128], index: 3, kind: input, shape index: {}]
  %s4 = inlined_call_operand.vmem [shape: f32[2,128], index: 4, kind: input, shape index: {}]
  %s5 = inlined_call_operand.vmem [shape: f32[1,128], index: 5, kind: input, shape index: {}]
  %s6 = inlined_call_operand.vmem [shape: f32[1,128], index: 6, kind: input, shape index: {}]
  %s7 = inlined_call_operand.hbm [shape: f32[512,128], index: 7, kind: output, shape index: {}]
  %s8 = sld [smem:[#allocation0]]
  $region61: #{tpu_custom_call.1} parent=0
    _
  %s10 = ssub.s32 1, %s8
  %s11 = scalar_select 0, %s10, %s8
  $region1: #{tpu_custom_call.1} parent=0
    #allocation2 [shape = 'u8[131072]{0}', space=vmem, size = 0x20000, scoped, tag = 'output window, operand 0']
    #allocation3 [shape = 's32[2]{0}', space=sflag, size = 0x8, scoped, tag = 'scoped memory for tpu_custom_call.1']
    %12 = vsyncpa [#allocation3], 0
    %s13 = scalar_lea.sflag [#allocation3], 1
    %14 = vsyncpa %s13, 0
    loop: start=0, step=1, limit=6
    $region2: #{tpu_custom_call.1} parent=1 // loop_pre_header
      _
    $region3: #{tpu_custom_call.1} parent=1 // loop_header
      %s16 = sphi 0, %s20
      %p17 = scmp.ge.s32.totalorder %s16, 6
      %s26 = sphi 0, %s28
      %s29 = sphi 0, %s26
      %s30 = sphi 0, %s29
      %s46 = sphi 0, %s30
      %s52 = sphi 0, %s54
      %s55 = sphi 0, %s52
      %s56 = sphi 0, %s55
      %s72 = sphi 0, %s56
      %s102 = sphi 0, %s104
      %s105 = sphi 0, %s102
      %s106 = sphi 0, %s105
      %s122 = sphi 0, %s106
      %s126 = sphi 0, %s126
      %s128 = sphi 0, %s126
      %s129 = sphi 0, %s128
      %s143 = sphi 0, %s129
      %s147 = sphi 0, %s147
      %s149 = sphi 0, %s147
      %s150 = sphi 0, %s149
      %s164 = sphi 0, %s150
      %s168 = sphi 0, %s168
      %s170 = sphi 0, %s168
      %s171 = sphi 0, %s170
      %s185 = sphi 0, %s171
      %s189 = sphi 0, %s189
      %s191 = sphi 0, %s189
      %s192 = sphi 0, %s191
      %s206 = sphi 0, %s192
      %s212 = sphi 0, %s214
      %s215 = sphi 0, %s212
      %s216 = sphi 0, %s215
      %s232 = sphi 0, %s216
    $region4: #{tpu_custom_call.1} parent=1 // loop_header_branch
      %19 = sbr.rel (%p17) target = $region8
    $region5: #{tpu_custom_call.1} parent=1 // loop_body
      %s21 = ssub.s32 %s16, 1
      %s22 = ssub.s32 %s16, 2
      %s23 = sadd.s32 %s16, 1
      %s24 = ssub.s32 %s16, %s23
      %p25 = scmp.eq.s32.totalorder %s24, 0
      %s27 = sadd.s32 %s26, 1
      %s28 = scalar_select %p25, %s26, %s27
      %p31 = pneg %p25
      %p32 = scmp.eq.s32.totalorder %s16, 3
      %p33 = por %p31, %p32
      %p34 = scmp.ne.s32.totalorder %s26, %s29
      %p35 = scmp.eq.s32.totalorder %s16, 0
      %p36 = por %p34, %p35
      %p37 = scmp.ne.s32.totalorder %s26, %s29
      %p38 = scmp.eq.s32.totalorder %s21, 3
      %p39 = por %p37, %p38
      %p40 = scmp.ne.s32.totalorder %s29, %s30
      %p41 = scmp.eq.s32.totalorder %s21, 0
      %p42 = por %p40, %p41
      %p43 = scmp.ne.s32.totalorder %s29, %s30
      %p44 = scmp.eq.s32.totalorder %s22, 3
      %p45 = por %p43, %p44
      %p47 = scmp.ne.s32.totalorder %s30, %s46
      %p48 = scmp.eq.s32.totalorder %s22, 0
      %p49 = por %p47, %p48
      %s50 = ssub.s32 %s16, %s23
      %p51 = scmp.eq.s32.totalorder %s50, 0
      %s53 = sadd.s32 %s52, 1
      %s54 = scalar_select %p51, %s52, %s53
      %p57 = pneg %p51
      %p58 = scmp.eq.s32.totalorder %s16, 3
      %p59 = por %p57, %p58
      %p60 = scmp.ne.s32.totalorder %s52, %s55
      %p61 = scmp.eq.s32.totalorder %s16, 0
      %p62 = por %p60, %p61
      %p63 = scmp.ne.s32.totalorder %s52, %s55
      %p64 = scmp.eq.s32.totalorder %s21, 3
      %p65 = por %p63, %p64
      %p66 = scmp.ne.s32.totalorder %s55, %s56
      %p67 = scmp.eq.s32.totalorder %s21, 0
      %p68 = por %p66, %p67
      %p69 = scmp.ne.s32.totalorder %s55, %s56
      %p70 = scmp.eq.s32.totalorder %s22, 3
      %p71 = por %p69, %p70
      %p73 = scmp.ne.s32.totalorder %s56, %s72
      %p74 = scmp.eq.s32.totalorder %s22, 0
      %p75 = por %p73, %p74
      %p76 = scmp.lt.s32.totalorder %s16, 0
      %s77 = ssub.s32 0, %s16
      %s78 = scalar_select %p76, %s77, %s16
      %s79 = sand.u32 %s78, 1
      %s80 = ssub.s32 0, %s79
      %s81 = scalar_select %p76, %s80, %s79
      %p82 = scmp.ne.s32.totalorder %s81, 0
      %p83 = scmp.lt.s32.totalorder %s81, 0
      %p84 = pnand %p83, %p82
      %p85 = pneg %p84
      %s86 = sadd.s32 %s81, 2
      %s87 = scalar_select %p85, %s86, %s81
      %p88 = scmp.lt.s32.totalorder %s23, 0
      %s89 = ssub.s32 0, %s23
      %s90 = scalar_select %p88, %s89, %s23
      %s91 = sand.u32 %s90, 1
      %s92 = ssub.s32 0, %s91
      %s93 = scalar_select %p88, %s92, %s91
      %p94 = scmp.ne.s32.totalorder %s93, 0
      %p95 = scmp.lt.s32.totalorder %s93, 0
      %p96 = pnand %p95, %p94
      %p97 = pneg %p96
      %s98 = sadd.s32 %s93, 2
      %s99 = scalar_select %p97, %s98, %s93
      %s100 = ssub.s32 %s87, %s99
      %p101 = scmp.eq.s32.totalorder %s100, 0
      %s103 = sadd.s32 %s102, 1
      %s104 = scalar_select %p101, %s102, %s103
      %p107 = pneg %p101
      %p108 = scmp.eq.s32.totalorder %s16, 3
      %p109 = por %p107, %p108
      %p110 = scmp.ne.s32.totalorder %s102, %s105
      %p111 = scmp.eq.s32.totalorder %s16, 0
      %p112 = por %p110, %p111
      %p113 = scmp.ne.s32.totalorder %s102, %s105
      %p114 = scmp.eq.s32.totalorder %s21, 3
      %p115 = por %p113, %p114
      %p116 = scmp.ne.s32.totalorder %s105, %s106
      %p117 = scmp.eq.s32.totalorder %s21, 0
      %p118 = por %p116, %p117
      %p119 = scmp.ne.s32.totalorder %s105, %s106
      %p120 = scmp.eq.s32.totalorder %s22, 3
      %p121 = por %p119, %p120
      %p123 = scmp.ne.s32.totalorder %s106, %s122
      %p124 = scmp.eq.s32.totalorder %s22, 0
      %p125 = por %p123, %p124
      %s127 = sadd.s32 %s126, 1
      %p130 = scmp.eq.s32.totalorder %s16, 3
      %p131 = scmp.ne.s32.totalorder %s126, %s128
      %p132 = scmp.eq.s32.totalorder %s16, 0
      %p133 = por %p131, %p132
      %p134 = scmp.ne.s32.totalorder %s126, %s128
      %p135 = scmp.eq.s32.totalorder %s21, 3
      %p136 = por %p134, %p135
      %p137 = scmp.ne.s32.totalorder %s128, %s129
      %p138 = scmp.eq.s32.totalorder %s21, 0
      %p139 = por %p137, %p138
      %p140 = scmp.ne.s32.totalorder %s128, %s129
      %p141 = scmp.eq.s32.totalorder %s22, 3
      %p142 = por %p140, %p141
      %p144 = scmp.ne.s32.totalorder %s129, %s143
      %p145 = scmp.eq.s32.totalorder %s22, 0
      %p146 = por %p144, %p145
      %s148 = sadd.s32 %s147, 1
      %p151 = scmp.eq.s32.totalorder %s16, 3
      %p152 = scmp.ne.s32.totalorder %s147, %s149
      %p153 = scmp.eq.s32.totalorder %s16, 0
      %p154 = por %p152, %p153
      %p155 = scmp.ne.s32.totalorder %s147, %s149
      %p156 = scmp.eq.s32.totalorder %s21, 3
      %p157 = por %p155, %p156
      %p158 = scmp.ne.s32.totalorder %s149, %s150
      %p159 = scmp.eq.s32.totalorder %s21, 0
      %p160 = por %p158, %p159
      %p161 = scmp.ne.s32.totalorder %s149, %s150
      %p162 = scmp.eq.s32.totalorder %s22, 3
      %p163 = por %p161, %p162
      %p165 = scmp.ne.s32.totalorder %s150, %s164
      %p166 = scmp.eq.s32.totalorder %s22, 0
      %p167 = por %p165, %p166
      %s169 = sadd.s32 %s168, 1
      %p172 = scmp.eq.s32.totalorder %s16, 3
      %p173 = scmp.ne.s32.totalorder %s168, %s170
      %p174 = scmp.eq.s32.totalorder %s16, 0
      %p175 = por %p173, %p174
      %p176 = scmp.ne.s32.totalorder %s168, %s170
      %p177 = scmp.eq.s32.totalorder %s21, 3
      %p178 = por %p176, %p177
      %p179 = scmp.ne.s32.totalorder %s170, %s171
      %p180 = scmp.eq.s32.totalorder %s21, 0
      %p181 = por %p179, %p180
      %p182 = scmp.ne.s32.totalorder %s170, %s171
      %p183 = scmp.eq.s32.totalorder %s22, 3
      %p184 = por %p182, %p183
      %p186 = scmp.ne.s32.totalorder %s171, %s185
      %p187 = scmp.eq.s32.totalorder %s22, 0
      %p188 = por %p186, %p187
      %s190 = sadd.s32 %s189, 1
      %p193 = scmp.eq.s32.totalorder %s16, 3
      %p194 = scmp.ne.s32.totalorder %s189, %s191
      %p195 = scmp.eq.s32.totalorder %s16, 0
      %p196 = por %p194, %p195
      %p197 = scmp.ne.s32.totalorder %s189, %s191
      %p198 = scmp.eq.s32.totalorder %s21, 3
      %p199 = por %p197, %p198
      %p200 = scmp.ne.s32.totalorder %s191, %s192
      %p201 = scmp.eq.s32.totalorder %s21, 0
      %p202 = por %p200, %p201
      %p203 = scmp.ne.s32.totalorder %s191, %s192
      %p204 = scmp.eq.s32.totalorder %s22, 3
      %p205 = por %p203, %p204
      %p207 = scmp.ne.s32.totalorder %s192, %s206
      %p208 = scmp.eq.s32.totalorder %s22, 0
      %p209 = por %p207, %p208
      %s210 = ssub.s32 %s16, %s23
      %p211 = scmp.eq.s32.totalorder %s210, 0
      %s213 = sadd.s32 %s212, 1
      %s214 = scalar_select %p211, %s212, %s213
      %p217 = pneg %p211
      %p218 = scmp.eq.s32.totalorder %s16, 3
      %p219 = por %p217, %p218
      %p220 = scmp.ne.s32.totalorder %s212, %s215
      %p221 = scmp.eq.s32.totalorder %s16, 0
      %p222 = por %p220, %p221
      %p223 = scmp.ne.s32.totalorder %s212, %s215
      %p224 = scmp.eq.s32.totalorder %s21, 3
      %p225 = por %p223, %p224
      %p226 = scmp.ne.s32.totalorder %s215, %s216
      %p227 = scmp.eq.s32.totalorder %s21, 0
      %p228 = por %p226, %p227
      %p229 = scmp.ne.s32.totalorder %s215, %s216
      %p230 = scmp.eq.s32.totalorder %s22, 3
      %p231 = por %p229, %p230
      %p233 = scmp.ne.s32.totalorder %s216, %s232
      %p234 = scmp.eq.s32.totalorder %s22, 0
      %p235 = por %p233, %p234
      %p236 = scmp.le.s32.totalorder 1, %s16
      %p237 = scmp.lt.s32.totalorder %s16, 5
      %p238 = pnand %p236, %p237
      %p239 = pneg %p238
      // Predicated region
      $region9: #{tpu_custom_call.1} parent=5 // pred_check
        _
      $region10: #{tpu_custom_call.1} parent=5 // pred_check_branch
        %241 = sbr.rel (%p238) target = $region12
      $region11: #{tpu_custom_call.1} parent=5 // pred_region
        %s242 = ssub.s32 %s16, 1
        // Predicated region
        $region13: #{tpu_custom_call.1} parent=11 // pred_check
          %p243 = pneg %p139
        $region14: #{tpu_custom_call.1} parent=11 // pred_check_branch
          %245 = sbr.rel (%p243) target = $region16
        $region15: #{tpu_custom_call.1} parent=11 // pred_region
          _
        $region16: #{tpu_custom_call.1} parent=11 // pred_fallthru
          _
        // Predicated region
        $region17: #{tpu_custom_call.1} parent=11 // pred_check
          %p246 = pneg %p160
        $region18: #{tpu_custom_call.1} parent=11 // pred_check_branch
          %248 = sbr.rel (%p246) target = $region20
        $region19: #{tpu_custom_call.1} parent=11 // pred_region
          _
        $region20: #{tpu_custom_call.1} parent=11 // pred_fallthru
          _
        // Predicated region
        $region21: #{tpu_custom_call.1} parent=11 // pred_check
          %p249 = pneg %p181
        $region22: #{tpu_custom_call.1} parent=11 // pred_check_branch
          %251 = sbr.rel (%p249) target = $region24
        $region23: #{tpu_custom_call.1} parent=11 // pred_region
          _
        $region24: #{tpu_custom_call.1} parent=11 // pred_fallthru
          _
        // Predicated region
        $region25: #{tpu_custom_call.1} parent=11 // pred_check
          %p252 = pneg %p202
        $region26: #{tpu_custom_call.1} parent=11 // pred_check_branch
          %254 = sbr.rel (%p252) target = $region28
        $region27: #{tpu_custom_call.1} parent=11 // pred_region
          _
        $region28: #{tpu_custom_call.1} parent=11 // pred_fallthru
          _
      $region12: #{tpu_custom_call.1} parent=5 // pred_fallthru
        _
      %p255 = scmp.lt.s32.totalorder %s16, 4
      // Predicated region
      $region29: #{tpu_custom_call.1} parent=5 // pred_check
        %p256 = pneg %p255
      $region30: #{tpu_custom_call.1} parent=5 // pred_check_branch
        %258 = sbr.rel (%p256) target = $region32
      $region31: #{tpu_custom_call.1} parent=5 // pred_region
        // Predicated region
        $region33: #{tpu_custom_call.1} parent=31 // pred_check
          %p259 = pneg %p36
        $region34: #{tpu_custom_call.1} parent=31 // pred_check_branch
          %261 = sbr.rel (%p259) target = $region36
        $region35: #{tpu_custom_call.1} parent=31 // pred_region
          %s262 = smul.u32 16, %s16
          %p263 = scmp.lt.s32.totalorder %s262, 63
          %s264 = scalar_select %p263, %s262, 63
          %s265 = smul.addr %s264, 8
          %s266 = scalar_lea.vmem %s0, %s265
          %s267 = smul.u32 16, %s16
        $region36: #{tpu_custom_call.1} parent=31 // pred_fallthru
          _
        // Predicated region
        $region37: #{tpu_custom_call.1} parent=31 // pred_check
          %p268 = pneg %p62
        $region38: #{tpu_custom_call.1} parent=31 // pred_check_branch
          %270 = sbr.rel (%p268) target = $region40
        $region39: #{tpu_custom_call.1} parent=31 // pred_region
          %s271 = smul.u32 16, %s16
          %p272 = scmp.lt.s32.totalorder %s271, 63
          %s273 = scalar_select %p272, %s271, 63
          %s274 = smul.addr %s273, 8
          %s275 = scalar_lea.vmem %s1, %s274
          %s276 = smul.u32 16, %s16
        $region40: #{tpu_custom_call.1} parent=31 // pred_fallthru
          _
        // Predicated region
        $region41: #{tpu_custom_call.1} parent=31 // pred_check
          %p277 = pneg %p112
        $region42: #{tpu_custom_call.1} parent=31 // pred_check_branch
          %279 = sbr.rel (%p277) target = $region44
        $region43: #{tpu_custom_call.1} parent=31 // pred_region
          %p280 = scmp.lt.s32.totalorder %s16, 0
          %s281 = ssub.s32 0, %s16
          %s282 = scalar_select %p280, %s281, %s16
          %s283 = sand.u32 %s282, 1
          %s284 = ssub.s32 0, %s283
          %s285 = scalar_select %p280, %s284, %s283
          %p286 = scmp.ne.s32.totalorder %s285, 0
          %p287 = scmp.lt.s32.totalorder %s285, 0
          %p288 = pnand %p287, %p286
          %p289 = pneg %p288
          %s290 = sadd.s32 %s285, 2
          %s291 = scalar_select %p289, %s290, %s285
          %s292 = smul.u32 16, %s291
          %p293 = scmp.lt.s32.totalorder %s292, 31
          %s294 = scalar_select %p293, %s292, 31
          %s295 = smul.addr %s294, 8
          %s296 = scalar_lea.vmem %s2, %s295
          %p297 = scmp.lt.s32.totalorder %s16, 0
          %s298 = ssub.s32 0, %s16
          %s299 = scalar_select %p297, %s298, %s16
          %s300 = sand.u32 %s299, 1
          %s301 = ssub.s32 0, %s300
          %s302 = scalar_select %p297, %s301, %s300
          %p303 = scmp.ne.s32.totalorder %s302, 0
          %p304 = scmp.lt.s32.totalorder %s302, 0
          %p305 = pnand %p304, %p303
          %p306 = pneg %p305
          %s307 = sadd.s32 %s302, 2
          %s308 = scalar_select %p306, %s307, %s302
          %s309 = smul.u32 16, %s308
        $region44: #{tpu_custom_call.1} parent=31 // pred_fallthru
          _
      $region32: #{tpu_custom_call.1} parent=5 // pred_fallthru
        _
      %p310 = scmp.le.s32.totalorder 1, %s16
      %p311 = scmp.lt.s32.totalorder %s16, 5
      %p312 = pnand %p310, %p311
      %p313 = pneg %p312
      // Predicated region
      $region45: #{tpu_custom_call.1} parent=5 // pred_check
        _
      $region46: #{tpu_custom_call.1} parent=5 // pred_check_branch
        %315 = sbr.rel (%p312) target = $region48
      $region47: #{tpu_custom_call.1} parent=5 // pred_region
        %s316 = ssub.s32 %s16, 1
        %s317 = smul.u32 16, %s21
        %p318 = scmp.lt.s32.totalorder %s317, 63
        %s319 = scalar_select %p318, %s317, 63
        %s320 = smul.addr %s319, 8
        %s321 = scalar_lea.vmem %s0, %s320
        %p322 = pneg %p42
        %p323 = pneg %p39
        %s324 = smul.u32 16, %s21
        %p325 = scmp.lt.s32.totalorder %s324, 63
        %s326 = scalar_select %p325, %s324, 63
        %s327 = smul.addr %s326, 8
        %s328 = scalar_lea.vmem %s1, %s327
        %p329 = pneg %p68
        %p330 = pneg %p65
        %p331 = scmp.lt.s32.totalorder %s21, 0
        %s332 = ssub.s32 0, %s21
        %s333 = scalar_select %p331, %s332, %s21
        %s334 = sand.u32 %s333, 1
        %s335 = ssub.s32 0, %s334
        %s336 = scalar_select %p331, %s335, %s334
        %p337 = scmp.ne.s32.totalorder %s336, 0
        %p338 = scmp.lt.s32.totalorder %s336, 0
        %p339 = pnand %p338, %p337
        %p340 = pneg %p339
        %s341 = sadd.s32 %s336, 2
        %s342 = scalar_select %p340, %s341, %s336
        %s343 = smul.u32 16, %s342
        %p344 = scmp.lt.s32.totalorder %s343, 31
        %s345 = scalar_select %p344, %s343, 31
        %s346 = smul.addr %s345, 8
        %s347 = scalar_lea.vmem %s2, %s346
        %p348 = pneg %p118
        %p349 = pneg %p115
        %p350 = pneg %p139
        %p351 = pneg %p136
        %p352 = pneg %p160
        %p353 = pneg %p157
        %p354 = pneg %p181
        %p355 = pneg %p178
        %p356 = pneg %p202
        %p357 = pneg %p199
        %p358 = pneg %p228
        %p359 = pneg %p225
        %s360 = sand.u32 %s215, 1
        %s361 = scalar_lea.sflag [#allocation3], %s360
        %s362 = sand.u32 %s215, 1
        %s363 = smul.addr %s362, 128
        %s364 = scalar_lea.vmem [#allocation2], %s363
        %s365 = smul.u32 16, %s21
        %p366 = scmp.lt.s32.totalorder %s365, 63
        %s367 = scalar_select %p366, %s365, 63
        %s368 = smul.addr %s367, 8
        %s369 = scalar_lea.vmem %s0, %s368
        %s370 = smul.u32 16, %s21
        %s371 = smul.u32 16, %s21
        %p372 = scmp.lt.s32.totalorder %s371, 63
        %s373 = scalar_select %p372, %s371, 63
        %s374 = smul.addr %s373, 8
        %s375 = scalar_lea.vmem %s1, %s374
        %s376 = smul.u32 16, %s21
        %p377 = scmp.lt.s32.totalorder %s21, 0
        %s378 = ssub.s32 0, %s21
        %s379 = scalar_select %p377, %s378, %s21
        %s380 = sand.u32 %s379, 1
        %s381 = ssub.s32 0, %s380
        %s382 = scalar_select %p377, %s381, %s380
        %p383 = scmp.ne.s32.totalorder %s382, 0
        %p384 = scmp.lt.s32.totalorder %s382, 0
        %p385 = pnand %p384, %p383
        %p386 = pneg %p385
        %s387 = sadd.s32 %s382, 2
        %s388 = scalar_select %p386, %s387, %s382
        %s389 = smul.u32 16, %s388
        %p390 = scmp.lt.s32.totalorder %s389, 31
        %s391 = scalar_select %p390, %s389, 31
        %s392 = smul.addr %s391, 8
        %s393 = scalar_lea.vmem %s2, %s392
        %p394 = scmp.lt.s32.totalorder %s21, 0
        %s395 = ssub.s32 0, %s21
        %s396 = scalar_select %p394, %s395, %s21
        %s397 = sand.u32 %s396, 1
        %s398 = ssub.s32 0, %s397
        %s399 = scalar_select %p394, %s398, %s397
        %p400 = scmp.ne.s32.totalorder %s399, 0
        %p401 = scmp.lt.s32.totalorder %s399, 0
        %p402 = pnand %p401, %p400
        %p403 = pneg %p402
        %s404 = sadd.s32 %s399, 2
        %s405 = scalar_select %p403, %s404, %s399
        %s406 = smul.u32 16, %s405
        %s407 = smul.u32 16, %s21
        %v408 = vld [vmem:[%s369] sm:$0xff]
        %v409 = vld [vmem:[%s369 + $0x8] sm:$0xff]
        %v410 = vld [vmem:[%s369 + $0x10] sm:$0xff]
        %v411 = vld [vmem:[%s369 + $0x18] sm:$0xff]
        %v412 = vld [vmem:[%s369 + $0x20] sm:$0xff]
        %v413 = vld [vmem:[%s369 + $0x28] sm:$0xff]
        %v414 = vld [vmem:[%s369 + $0x30] sm:$0xff]
        %v415 = vld [vmem:[%s369 + $0x38] sm:$0xff]
        %v416 = vld [vmem:[%s369 + $0x40] sm:$0xff]
        %v417 = vld [vmem:[%s369 + $0x48] sm:$0xff]
        %v418 = vld [vmem:[%s369 + $0x50] sm:$0xff]
        %v419 = vld [vmem:[%s369 + $0x58] sm:$0xff]
        %v420 = vld [vmem:[%s369 + $0x60] sm:$0xff]
        %v421 = vld [vmem:[%s369 + $0x68] sm:$0xff]
        %v422 = vld [vmem:[%s369 + $0x70] sm:$0xff]
        %v423 = vld [vmem:[%s369 + $0x78] sm:$0xff]
        %v424 = vlaneseq
        %v425 = vand.u32 %v424, 127
        %426 = vset.pattern.permute.xlu0 0
        %427 = vperm.xlu0 %426, %v408
        %v428 = vpop.permute.xlu0 %427
        %429 = vset.pattern.permute.xlu0 0
        %430 = vperm.xlu0 %429, %v409
        %v431 = vpop.permute.xlu0 %430
        %432 = vset.pattern.permute.xlu0 0
        %433 = vperm.xlu0 %432, %v410
        %v434 = vpop.permute.xlu0 %433
        %435 = vset.pattern.permute.xlu0 0
        %436 = vperm.xlu0 %435, %v411
        %v437 = vpop.permute.xlu0 %436
        %438 = vset.pattern.permute.xlu0 0
        %439 = vperm.xlu0 %438, %v412
        %v440 = vpop.permute.xlu0 %439
        %441 = vset.pattern.permute.xlu0 0
        %442 = vperm.xlu0 %441, %v413
        %v443 = vpop.permute.xlu0 %442
        %444 = vset.pattern.permute.xlu0 0
        %445 = vperm.xlu0 %444, %v414
        %v446 = vpop.permute.xlu0 %445
        %447 = vset.pattern.permute.xlu0 0
        %448 = vperm.xlu0 %447, %v415
        %v449 = vpop.permute.xlu0 %448
        %450 = vset.pattern.permute.xlu0 0
        %451 = vperm.xlu0 %450, %v416
        %v452 = vpop.permute.xlu0 %451
        %453 = vset.pattern.permute.xlu0 0
        %454 = vperm.xlu0 %453, %v417
        %v455 = vpop.permute.xlu0 %454
        %456 = vset.pattern.permute.xlu0 0
        %457 = vperm.xlu0 %456, %v418
        %v458 = vpop.permute.xlu0 %457
        %459 = vset.pattern.permute.xlu0 0
        %460 = vperm.xlu0 %459, %v419
        %v461 = vpop.permute.xlu0 %460
        %462 = vset.pattern.permute.xlu0 0
        %463 = vperm.xlu0 %462, %v420
        %v464 = vpop.permute.xlu0 %463
        %465 = vset.pattern.permute.xlu0 0
        %466 = vperm.xlu0 %465, %v421
        %v467 = vpop.permute.xlu0 %466
        %468 = vset.pattern.permute.xlu0 0
        %469 = vperm.xlu0 %468, %v422
        %v470 = vpop.permute.xlu0 %469
        %471 = vset.pattern.permute.xlu0 0
        %472 = vperm.xlu0 %471, %v423
        %v473 = vpop.permute.xlu0 %472
        %vm474 = vcmp.eq.s32.totalorder %v428, %v425
        %vm475 = vcmp.eq.s32.totalorder %v431, %v425
        %vm476 = vcmp.eq.s32.totalorder %v434, %v425
        %vm477 = vcmp.eq.s32.totalorder %v437, %v425
        %vm478 = vcmp.eq.s32.totalorder %v440, %v425
        %vm479 = vcmp.eq.s32.totalorder %v443, %v425
        %vm480 = vcmp.eq.s32.totalorder %v446, %v425
        %vm481 = vcmp.eq.s32.totalorder %v449, %v425
        %vm482 = vcmp.eq.s32.totalorder %v452, %v425
        %vm483 = vcmp.eq.s32.totalorder %v455, %v425
        %vm484 = vcmp.eq.s32.totalorder %v458, %v425
        %vm485 = vcmp.eq.s32.totalorder %v461, %v425
        %vm486 = vcmp.eq.s32.totalorder %v464, %v425
        %vm487 = vcmp.eq.s32.totalorder %v467, %v425
        %vm488 = vcmp.eq.s32.totalorder %v470, %v425
        %vm489 = vcmp.eq.s32.totalorder %v473, %v425
        %v490 = vsel %vm474, 1, 0
        %v491 = vsel %vm475, 1, 0
        %v492 = vsel %vm476, 1, 0
        %v493 = vsel %vm477, 1, 0
        %v494 = vsel %vm478, 1, 0
        %v495 = vsel %vm479, 1, 0
        %v496 = vsel %vm480, 1, 0
        %v497 = vsel %vm481, 1, 0
        %v498 = vsel %vm482, 1, 0
        %v499 = vsel %vm483, 1, 0
        %v500 = vsel %vm484, 1, 0
        %v501 = vsel %vm485, 1, 0
        %v502 = vsel %vm486, 1, 0
        %v503 = vsel %vm487, 1, 0
        %v504 = vsel %vm488, 1, 0
        %v505 = vsel %vm489, 1, 0
        %v506 = vcvt.s32.f32 %v490
        %v507 = vcvt.s32.f32 %v491
        %v508 = vcvt.s32.f32 %v492
        %v509 = vcvt.s32.f32 %v493
        %v510 = vcvt.s32.f32 %v494
        %v511 = vcvt.s32.f32 %v495
        %v512 = vcvt.s32.f32 %v496
        %v513 = vcvt.s32.f32 %v497
        %v514 = vcvt.s32.f32 %v498
        %v515 = vcvt.s32.f32 %v499
        %v516 = vcvt.s32.f32 %v500
        %v517 = vcvt.s32.f32 %v501
        %v518 = vcvt.s32.f32 %v502
        %v519 = vcvt.s32.f32 %v503
        %v520 = vcvt.s32.f32 %v504
        %v521 = vcvt.s32.f32 %v505
        %v522 = vld [vmem:[%s3] sm:$0xff]
        %v523 = vld [vmem:[%s3 + $0x8] sm:$0xff]
        %v524 = vld [vmem:[%s3 + $0x10] sm:$0xff]
        %v525 = vld [vmem:[%s3 + $0x18] sm:$0xff]
        %v526 = vld [vmem:[%s3 + $0x20] sm:$0xff]
        %v527 = vld [vmem:[%s3 + $0x28] sm:$0xff]
        %v528 = vld [vmem:[%s3 + $0x30] sm:$0xff]
        %v529 = vld [vmem:[%s3 + $0x38] sm:$0xff]
        %v530 = vld [vmem:[%s3 + $0x40] sm:$0xff]
        %v531 = vld [vmem:[%s3 + $0x48] sm:$0xff]
        %v532 = vld [vmem:[%s3 + $0x50] sm:$0xff]
        %v533 = vld [vmem:[%s3 + $0x58] sm:$0xff]
        %v534 = vld [vmem:[%s3 + $0x60] sm:$0xff]
        %v535 = vld [vmem:[%s393] sm:$0xff]
        %v536 = vld [vmem:[%s393 + $0x8] sm:$0xff]
        %v537 = vld [vmem:[%s393 + $0x10] sm:$0xff]
        %v538 = vld [vmem:[%s393 + $0x18] sm:$0xff]
        %v539 = vld [vmem:[%s393 + $0x20] sm:$0xff]
        %v540 = vld [vmem:[%s393 + $0x28] sm:$0xff]
        %v541 = vld [vmem:[%s393 + $0x30] sm:$0xff]
        %v542 = vld [vmem:[%s393 + $0x38] sm:$0xff]
        %v543 = vld [vmem:[%s393 + $0x40] sm:$0xff]
        %v544 = vld [vmem:[%s393 + $0x48] sm:$0xff]
        %v545 = vld [vmem:[%s393 + $0x50] sm:$0xff]
        %v546 = vld [vmem:[%s393 + $0x58] sm:$0xff]
        %v547 = vld [vmem:[%s393 + $0x60] sm:$0xff]
        %v548 = vld [vmem:[%s393 + $0x68] sm:$0xff]
        %v549 = vld [vmem:[%s393 + $0x70] sm:$0xff]
        %v550 = vld [vmem:[%s393 + $0x78] sm:$0xff]
        %v551 = vld [vmem:[%s375] sm:$0xff]
        %v552 = vld [vmem:[%s375 + $0x8] sm:$0xff]
        %v553 = vld [vmem:[%s375 + $0x10] sm:$0xff]
        %v554 = vld [vmem:[%s375 + $0x18] sm:$0xff]
        %v555 = vld [vmem:[%s375 + $0x20] sm:$0xff]
        %v556 = vld [vmem:[%s375 + $0x28] sm:$0xff]
        %v557 = vld [vmem:[%s375 + $0x30] sm:$0xff]
        %v558 = vld [vmem:[%s375 + $0x38] sm:$0xff]
        %v559 = vld [vmem:[%s375 + $0x40] sm:$0xff]
        %v560 = vld [vmem:[%s375 + $0x48] sm:$0xff]
        %v561 = vld [vmem:[%s375 + $0x50] sm:$0xff]
        %v562 = vld [vmem:[%s375 + $0x58] sm:$0xff]
        %v563 = vld [vmem:[%s375 + $0x60] sm:$0xff]
        %v564 = vld [vmem:[%s375 + $0x68] sm:$0xff]
        %v565 = vld [vmem:[%s375 + $0x70] sm:$0xff]
        %v566 = vld [vmem:[%s375 + $0x78] sm:$0xff]
        %v567 = vld [vmem:[%s4] sm:$0x3]
        %v568 = vlaneseq
        %v569 = vshrl.u32 %v568, 7
        %v570 = vsub.s32 0, %v569
        %v571 = vrot.slane %v567, %v570
        %vm572 = vcmp.eq.s32.totalorder %v551, 1
        %vm573 = vcmp.eq.s32.totalorder %v552, 1
        %vm574 = vcmp.eq.s32.totalorder %v553, 1
        %vm575 = vcmp.eq.s32.totalorder %v554, 1
        %vm576 = vcmp.eq.s32.totalorder %v555, 1
        %vm577 = vcmp.eq.s32.totalorder %v556, 1
        %vm578 = vcmp.eq.s32.totalorder %v557, 1
        %vm579 = vcmp.eq.s32.totalorder %v558, 1
        %vm580 = vcmp.eq.s32.totalorder %v559, 1
        %vm581 = vcmp.eq.s32.totalorder %v560, 1
        %vm582 = vcmp.eq.s32.totalorder %v561, 1
        %vm583 = vcmp.eq.s32.totalorder %v562, 1
        %vm584 = vcmp.eq.s32.totalorder %v563, 1
        %vm585 = vcmp.eq.s32.totalorder %v564, 1
        %vm586 = vcmp.eq.s32.totalorder %v565, 1
        %vm587 = vcmp.eq.s32.totalorder %v566, 1
        %v588 = vsel %vm572, 1, 0
        %v589 = vsel %vm573, 1, 0
        %v590 = vsel %vm574, 1, 0
        %v591 = vsel %vm575, 1, 0
        %v592 = vsel %vm576, 1, 0
        %v593 = vsel %vm577, 1, 0
        %v594 = vsel %vm578, 1, 0
        %v595 = vsel %vm579, 1, 0
        %v596 = vsel %vm580, 1, 0
        %v597 = vsel %vm581, 1, 0
        %v598 = vsel %vm582, 1, 0
        %v599 = vsel %vm583, 1, 0
        %v600 = vsel %vm584, 1, 0
        %v601 = vsel %vm585, 1, 0
        %v602 = vsel %vm586, 1, 0
        %v603 = vsel %vm587, 1, 0
        %604 = vset.pattern.permute.xlu0 0
        %605 = vperm.xlu0 %604, %v588
        %v606 = vpop.permute.xlu0 %605
        %607 = vset.pattern.permute.xlu0 0
        %608 = vperm.xlu0 %607, %v589
        %v609 = vpop.permute.xlu0 %608
        %610 = vset.pattern.permute.xlu0 0
        %611 = vperm.xlu0 %610, %v590
        %v612 = vpop.permute.xlu0 %611
        %613 = vset.pattern.permute.xlu0 0
        %614 = vperm.xlu0 %613, %v591
        %v615 = vpop.permute.xlu0 %614
        %616 = vset.pattern.permute.xlu0 0
        %617 = vperm.xlu0 %616, %v592
        %v618 = vpop.permute.xlu0 %617
        %619 = vset.pattern.permute.xlu0 0
        %620 = vperm.xlu0 %619, %v593
        %v621 = vpop.permute.xlu0 %620
        %622 = vset.pattern.permute.xlu0 0
        %623 = vperm.xlu0 %622, %v594
        %v624 = vpop.permute.xlu0 %623
        %625 = vset.pattern.permute.xlu0 0
        %626 = vperm.xlu0 %625, %v595
        %v627 = vpop.permute.xlu0 %626
        %628 = vset.pattern.permute.xlu0 0
        %629 = vperm.xlu0 %628, %v596
        %v630 = vpop.permute.xlu0 %629
        %631 = vset.pattern.permute.xlu0 0
        %632 = vperm.xlu0 %631, %v597
        %v633 = vpop.permute.xlu0 %632
        %634 = vset.pattern.permute.xlu0 0
        %635 = vperm.xlu0 %634, %v598
        %v636 = vpop.permute.xlu0 %635
        %637 = vset.pattern.permute.xlu0 0
        %638 = vperm.xlu0 %637, %v599
        %v639 = vpop.permute.xlu0 %638
        %640 = vset.pattern.permute.xlu0 0
        %641 = vperm.xlu0 %640, %v600
        %v642 = vpop.permute.xlu0 %641
        %643 = vset.pattern.permute.xlu0 0
        %644 = vperm.xlu0 %643, %v601
        %v645 = vpop.permute.xlu0 %644
        %646 = vset.pattern.permute.xlu0 0
        %647 = vperm.xlu0 %646, %v602
        %v648 = vpop.permute.xlu0 %647
        %649 = vset.pattern.permute.xlu0 0
        %650 = vperm.xlu0 %649, %v603
        %v651 = vpop.permute.xlu0 %650
        %vm652 = vcmp.eq.s32.totalorder %v606, 1
        %vm653 = vcmp.eq.s32.totalorder %v609, 1
        %vm654 = vcmp.eq.s32.totalorder %v612, 1
        %vm655 = vcmp.eq.s32.totalorder %v615, 1
        %vm656 = vcmp.eq.s32.totalorder %v618, 1
        %vm657 = vcmp.eq.s32.totalorder %v621, 1
        %vm658 = vcmp.eq.s32.totalorder %v624, 1
        %vm659 = vcmp.eq.s32.totalorder %v627, 1
        %vm660 = vcmp.eq.s32.totalorder %v630, 1
        %vm661 = vcmp.eq.s32.totalorder %v633, 1
        %vm662 = vcmp.eq.s32.totalorder %v636, 1
        %vm663 = vcmp.eq.s32.totalorder %v639, 1
        %vm664 = vcmp.eq.s32.totalorder %v642, 1
        %vm665 = vcmp.eq.s32.totalorder %v645, 1
        %vm666 = vcmp.eq.s32.totalorder %v648, 1
        %vm667 = vcmp.eq.s32.totalorder %v651, 1
        %v668 = vlaneseq
        %v669 = vshrl.u32 %v668, 7
        %v670 = vsub.s32 1, %v669
        %v671 = vrot.slane %v567, %v670
        %v672 = vsel %vm652, %v671, %v571
        %v673 = vsel %vm653, %v671, %v571
        %v674 = vsel %vm654, %v671, %v571
        %v675 = vsel %vm655, %v671, %v571
        %v676 = vsel %vm656, %v671, %v571
        %v677 = vsel %vm657, %v671, %v571
        %v678 = vsel %vm658, %v671, %v571
        %v679 = vsel %vm659, %v671, %v571
        %v680 = vsel %vm660, %v671, %v571
        %v681 = vsel %vm661, %v671, %v571
        %v682 = vsel %vm662, %v671, %v571
        %v683 = vsel %vm663, %v671, %v571
        %v684 = vsel %vm664, %v671, %v571
        %v685 = vsel %vm665, %v671, %v571
        %v686 = vsel %vm666, %v671, %v571
        %v687 = vsel %vm667, %v671, %v571
        %vm688 = vcmask 850944
        %v690 = vsel %vm688, %v506, 0
        %v693 = vsel %vm688, %v507, 0
        %v696 = vsel %vm688, %v508, 0
        %v699 = vsel %vm688, %v509, 0
        %v702 = vsel %vm688, %v510, 0
        %v705 = vsel %vm688, %v511, 0
        %v708 = vsel %vm688, %v512, 0
        %v711 = vsel %vm688, %v513, 0
        %v714 = vsel %vm688, %v514, 0
        %v717 = vsel %vm688, %v515, 0
        %v720 = vsel %vm688, %v516, 0
        %v723 = vsel %vm688, %v517, 0
        %v726 = vsel %vm688, %v518, 0
        %v729 = vsel %vm688, %v519, 0
        %v732 = vsel %vm688, %v520, 0
        %v735 = vsel %vm688, %v521, 0
        %737 = vmatprep.subr.mxu0 0.0
        %v738 = vand.u32 %v522, 4294901760
        %739 = vmatpush1.msra.mxu0 %v738
        %740 = vmatprep.subr.mxu0 0.0
        %v741 = vand.u32 %v523, 4294901760
        %742 = vmatpush1.msra.mxu0 %v741
        %743 = vmatprep.subr.mxu0 0.0
        %v744 = vand.u32 %v524, 4294901760
        %745 = vmatpush1.msra.mxu0 %v744
        %746 = vmatprep.subr.mxu0 0.0
        %v747 = vand.u32 %v525, 4294901760
        %748 = vmatpush1.msra.mxu0 %v747
        %749 = vmatprep.subr.mxu0 0.0
        %v750 = vand.u32 %v526, 4294901760
        %751 = vmatpush1.msra.mxu0 %v750
        %752 = vmatprep.subr.mxu0 0.0
        %v753 = vand.u32 %v527, 4294901760
        %754 = vmatpush1.msra.mxu0 %v753
        %755 = vmatprep.subr.mxu0 0.0
        %v756 = vand.u32 %v528, 4294901760
        %757 = vmatpush1.msra.mxu0 %v756
        %758 = vmatprep.subr.mxu0 0.0
        %v759 = vand.u32 %v529, 4294901760
        %760 = vmatpush1.msra.mxu0 %v759
        %761 = vmatprep.subr.mxu0 0.0
        %v762 = vand.u32 %v530, 4294901760
        %763 = vmatpush1.msra.mxu0 %v762
        %764 = vmatprep.subr.mxu0 0.0
        %v765 = vand.u32 %v531, 4294901760
        %766 = vmatpush1.msra.mxu0 %v765
        %767 = vmatprep.subr.mxu0 0.0
        %v768 = vand.u32 %v532, 4294901760
        %769 = vmatpush1.msra.mxu0 %v768
        %770 = vmatprep.subr.mxu0 0.0
        %v771 = vand.u32 %v533, 4294901760
        %772 = vmatpush1.msra.mxu0 %v771
        %773 = vmatprep.subr.mxu0 0.0
        %v774 = vand.u32 %v534, 4294901760
        %775 = vmatpush1.msra.mxu0 %v774
        %776 = vmatprep.subr.mxu0 0.0
        %777 = vmatpush1.msra.mxu0 0.0
        %778 = vmatprep.subr.mxu0 0.0
        %779 = vmatpush1.msra.mxu0 0.0
        %780 = vmatprep.subr.mxu0 0.0
        %781 = vmatpush1.msra.mxu0 0.0
        %782 = vmatprep.subr.mxu0 0.0
        %783 = vmatpush1.msra.mxu0 0.0
        %784 = vmatprep.subr.mxu0 0.0
        %785 = vmatpush1.msra.mxu0 0.0
        %786 = vmatprep.subr.mxu0 0.0
        %787 = vmatpush1.msra.mxu0 0.0
        %788 = vmatprep.subr.mxu0 0.0
        %789 = vmatpush1.msra.mxu0 0.0
        %790 = vmatprep.subr.mxu0 0.0
        %791 = vmatpush1.msra.mxu0 0.0
        %792 = vmatprep.subr.mxu0 0.0
        %793 = vmatpush1.msra.mxu0 0.0
        %794 = vmatprep.subr.mxu0 0.0
        %795 = vmatpush1.msra.mxu0 0.0
        %796 = vmatprep.subr.mxu0 0.0
        %797 = vmatpush1.msra.mxu0 0.0
        %798 = vmatprep.subr.mxu0 0.0
        %799 = vmatpush1.msra.mxu0 0.0
        %800 = vmatprep.subr.mxu0 0.0
        %801 = vmatpush1.msra.mxu0 0.0
        %802 = vmatprep.subr.mxu0 0.0
        %803 = vmatpush1.msra.mxu0 0.0
        %804 = vmatprep.subr.mxu0 0.0
        %805 = vmatpush1.msra.mxu0 0.0
        %806 = vmatprep.subr.mxu0 0.0
        %807 = vmatpush1.msra.mxu0 0.0
        %808 = vmatprep.subr.mxu0 0.0
        %809 = vmatpush1.msra.mxu0 0.0
        %810 = vmatprep.subr.mxu0 0.0
        %811 = vmatpush1.msra.mxu0 0.0
        %812 = vmatprep.subr.mxu0 0.0
        %813 = vmatpush1.msra.mxu0 0.0
        %814 = vmatprep.mubr.f32.mxu0 0.0
        %v815 = vand.u32 %v690, 4294901760
        %v816 = vsub.f32 %v690, %v815
        %v817 = vand.u32 %v816, 4294901760
        %v818 = vsub.f32 %v816, %v817
        %v819 = vand.u32 %v818, 4294901760
        %820 = vmatmul.mubr.f32.gmra.mrb[0].mxu0 %v819
        %v821 = vpop.f32.mrb[0].mxu0
        %v822 = vadd.f32 %v535, %v821
        %v823 = vpop.f32.mrb[0].mxu0
        %824 = vmatprep.mubr.f32.mxu0 0.0
        %v825 = vand.u32 %v693, 4294901760
        %v826 = vsub.f32 %v693, %v825
        %v827 = vand.u32 %v826, 4294901760
        %v828 = vsub.f32 %v826, %v827
        %v829 = vand.u32 %v828, 4294901760
        %830 = vmatmul.mubr.f32.gmra.mrb[0].mxu0 %v829
        %v831 = vpop.f32.mrb[0].mxu0
        %v832 = vadd.f32 %v536, %v831
        %v833 = vpop.f32.mrb[0].mxu0
        %834 = vmatprep.mubr.f32.mxu0 0.0
        %v835 = vand.u32 %v696, 4294901760
        %v836 = vsub.f32 %v696, %v835
        %v837 = vand.u32 %v836, 4294901760
        %v838 = vsub.f32 %v836, %v837
        %v839 = vand.u32 %v838, 4294901760
        %840 = vmatmul.mubr.f32.gmra.mrb[0].mxu0 %v839
        %v841 = vpop.f32.mrb[0].mxu0
        %v842 = vadd.f32 %v537, %v841
        %v843 = vpop.f32.mrb[0].mxu0
        %844 = vmatprep.mubr.f32.mxu0 0.0
        %v845 = vand.u32 %v699, 4294901760
        %v846 = vsub.f32 %v699, %v845
        %v847 = vand.u32 %v846, 4294901760
        %v848 = vsub.f32 %v846, %v847
        %v849 = vand.u32 %v848, 4294901760
        %850 = vmatmul.mubr.f32.gmra.mrb[0].mxu0 %v849
        %v851 = vpop.f32.mrb[0].mxu0
        %v852 = vadd.f32 %v538, %v851
        %v853 = vpop.f32.mrb[0].mxu0
        %854 = vmatprep.mubr.f32.mxu0 0.0
        %v855 = vand.u32 %v702, 4294901760
        %v856 = vsub.f32 %v702, %v855
        %v857 = vand.u32 %v856, 4294901760
        %v858 = vsub.f32 %v856, %v857
        %v859 = vand.u32 %v858, 4294901760
        %860 = vmatmul.mubr.f32.gmra.mrb[0].mxu0 %v859
        %v861 = vpop.f32.mrb[0].mxu0
        %v862 = vadd.f32 %v539, %v861
        %v863 = vpop.f32.mrb[0].mxu0
        %864 = vmatprep.mubr.f32.mxu0 0.0
        %v865 = vand.u32 %v705, 4294901760
        %v866 = vsub.f32 %v705, %v865
        %v867 = vand.u32 %v866, 4294901760
        %v868 = vsub.f32 %v866, %v867
        %v869 = vand.u32 %v868, 4294901760
        %870 = vmatmul.mubr.f32.gmra.mrb[0].mxu0 %v869
        %v871 = vpop.f32.mrb[0].mxu0
        %v872 = vadd.f32 %v540, %v871
        %v873 = vpop.f32.mrb[0].mxu0
        %874 = vmatprep.mubr.f32.mxu0 0.0
        %v875 = vand.u32 %v708, 4294901760
        %v876 = vsub.f32 %v708, %v875
        %v877 = vand.u32 %v876, 4294901760
        %v878 = vsub.f32 %v876, %v877
        %v879 = vand.u32 %v878, 4294901760
        %880 = vmatmul.mubr.f32.gmra.mrb[0].mxu0 %v879
        %v881 = vpop.f32.mrb[0].mxu0
        %v882 = vadd.f32 %v541, %v881
        %v883 = vpop.f32.mrb[0].mxu0
        %884 = vmatprep.mubr.f32.mxu0 0.0
        %v885 = vand.u32 %v711, 4294901760
        %v886 = vsub.f32 %v711, %v885
        %v887 = vand.u32 %v886, 4294901760
        %v888 = vsub.f32 %v886, %v887
        %v889 = vand.u32 %v888, 4294901760
        %890 = vmatmul.mubr.f32.gmra.mrb[0].mxu0 %v889
        %v891 = vpop.f32.mrb[0].mxu0
        %v892 = vadd.f32 %v542, %v891
        %v893 = vpop.f32.mrb[0].mxu0
        %894 = vmatprep.mubr.f32.mxu0 0.0
        %v895 = vand.u32 %v714, 4294901760
        %v896 = vsub.f32 %v714, %v895
        %v897 = vand.u32 %v896, 4294901760
        %v898 = vsub.f32 %v896, %v897
        %v899 = vand.u32 %v898, 4294901760
        %900 = vmatmul.mubr.f32.gmra.mrb[0].mxu0 %v899
        %v901 = vpop.f32.mrb[0].mxu0
        %v902 = vadd.f32 %v543, %v901
        %v903 = vpop.f32.mrb[0].mxu0
        %904 = vmatprep.mubr.f32.mxu0 0.0
        %v905 = vand.u32 %v717, 4294901760
        %v906 = vsub.f32 %v717, %v905
        %v907 = vand.u32 %v906, 4294901760
        %v908 = vsub.f32 %v906, %v907
        %v909 = vand.u32 %v908, 4294901760
        %910 = vmatmul.mubr.f32.gmra.mrb[0].mxu0 %v909
        %v911 = vpop.f32.mrb[0].mxu0
        %v912 = vadd.f32 %v544, %v911
        %v913 = vpop.f32.mrb[0].mxu0
        %914 = vmatprep.mubr.f32.mxu0 0.0
        %v915 = vand.u32 %v720, 4294901760
        %v916 = vsub.f32 %v720, %v915
        %v917 = vand.u32 %v916, 4294901760
        %v918 = vsub.f32 %v916, %v917
        %v919 = vand.u32 %v918, 4294901760
        %920 = vmatmul.mubr.f32.gmra.mrb[0].mxu0 %v919
        %v921 = vpop.f32.mrb[0].mxu0
        %v922 = vadd.f32 %v545, %v921
        %v923 = vpop.f32.mrb[0].mxu0
        %924 = vmatprep.mubr.f32.mxu0 0.0
        %v925 = vand.u32 %v723, 4294901760
        %v926 = vsub.f32 %v723, %v925
        %v927 = vand.u32 %v926, 4294901760
        %v928 = vsub.f32 %v926, %v927
        %v929 = vand.u32 %v928, 4294901760
        %930 = vmatmul.mubr.f32.gmra.mrb[0].mxu0 %v929
        %v931 = vpop.f32.mrb[0].mxu0
        %v932 = vadd.f32 %v546, %v931
        %v933 = vpop.f32.mrb[0].mxu0
        %934 = vmatprep.mubr.f32.mxu0 0.0
        %v935 = vand.u32 %v726, 4294901760
        %v936 = vsub.f32 %v726, %v935
        %v937 = vand.u32 %v936, 4294901760
        %v938 = vsub.f32 %v936, %v937
        %v939 = vand.u32 %v938, 4294901760
        %940 = vmatmul.mubr.f32.gmra.mrb[0].mxu0 %v939
        %v941 = vpop.f32.mrb[0].mxu0
        %v942 = vadd.f32 %v547, %v941
        %v943 = vpop.f32.mrb[0].mxu0
        %944 = vmatprep.mubr.f32.mxu0 0.0
        %v945 = vand.u32 %v729, 4294901760
        %v946 = vsub.f32 %v729, %v945
        %v947 = vand.u32 %v946, 4294901760
        %v948 = vsub.f32 %v946, %v947
        %v949 = vand.u32 %v948, 4294901760
        %950 = vmatmul.mubr.f32.gmra.mrb[0].mxu0 %v949
        %v951 = vpop.f32.mrb[0].mxu0
        %v952 = vadd.f32 %v548, %v951
        %v953 = vpop.f32.mrb[0].mxu0
        %954 = vmatprep.mubr.f32.mxu0 0.0
        %v955 = vand.u32 %v732, 4294901760
        %v956 = vsub.f32 %v732, %v955
        %v957 = vand.u32 %v956, 4294901760
        %v958 = vsub.f32 %v956, %v957
        %v959 = vand.u32 %v958, 4294901760
        %960 = vmatmul.mubr.f32.gmra.mrb[0].mxu0 %v959
        %v961 = vpop.f32.mrb[0].mxu0
        %v962 = vadd.f32 %v549, %v961
        %v963 = vpop.f32.mrb[0].mxu0
        %964 = vmatprep.mubr.f32.mxu0 0.0
        %v965 = vand.u32 %v735, 4294901760
        %v966 = vsub.f32 %v735, %v965
        %v967 = vand.u32 %v966, 4294901760
        %v968 = vsub.f32 %v966, %v967
        %v969 = vand.u32 %v968, 4294901760
        %970 = vmatmul.mubr.f32.gmra.mrb[0].mxu0 %v969
        %v971 = vpop.f32.mrb[0].mxu0
        %v972 = vadd.f32 %v550, %v971
        %v973 = vpop.f32.mrb[0].mxu0
        %974 = vdwg.mxu0
        %975 = vmatprep.subr.mxu0 0.0
        %v976 = vand.u32 %v522, 4294901760
        %v977 = vsub.f32 %v522, %v976
        %v978 = vand.u32 %v977, 4294901760
        %v979 = vsub.f32 %v977, %v978
        %v980 = vand.u32 %v979, 4294901760
        %981 = vmatpush1.msra.mxu0 %v980
        %982 = vmatprep.subr.mxu0 0.0
        %v983 = vand.u32 %v523, 4294901760
        %v984 = vsub.f32 %v523, %v983
        %v985 = vand.u32 %v984, 4294901760
        %v986 = vsub.f32 %v984, %v985
        %v987 = vand.u32 %v986, 4294901760
        %988 = vmatpush1.msra.mxu0 %v987
        %989 = vmatprep.subr.mxu0 0.0
        %v990 = vand.u32 %v524, 4294901760
        %v991 = vsub.f32 %v524, %v990
        %v992 = vand.u32 %v991, 4294901760
        %v993 = vsub.f32 %v991, %v992
        %v994 = vand.u32 %v993, 4294901760
        %995 = vmatpush1.msra.mxu0 %v994
        %996 = vmatprep.subr.mxu0 0.0
        %v997 = vand.u32 %v525, 4294901760
        %v998 = vsub.f32 %v525, %v997
        %v999 = vand.u32 %v998, 4294901760
        %v1000 = vsub.f32 %v998, %v999
        %v1001 = vand.u32 %v1000, 4294901760
        %1002 = vmatpush1.msra.mxu0 %v1001
        %1003 = vmatprep.subr.mxu0 0.0
        %v1004 = vand.u32 %v526, 4294901760
        %v1005 = vsub.f32 %v526, %v1004
        %v1006 = vand.u32 %v1005, 4294901760
        %v1007 = vsub.f32 %v1005, %v1006
        %v1008 = vand.u32 %v1007, 4294901760
        %1009 = vmatpush1.msra.mxu0 %v1008
        %1010 = vmatprep.subr.mxu0 0.0
        %v1011 = vand.u32 %v527, 4294901760
        %v1012 = vsub.f32 %v527, %v1011
        %v1013 = vand.u32 %v1012, 4294901760
        %v1014 = vsub.f32 %v1012, %v1013
        %v1015 = vand.u32 %v1014, 4294901760
        %1016 = vmatpush1.msra.mxu0 %v1015
        %1017 = vmatprep.subr.mxu0 0.0
        %v1018 = vand.u32 %v528, 4294901760
        %v1019 = vsub.f32 %v528, %v1018
        %v1020 = vand.u32 %v1019, 4294901760
        %v1021 = vsub.f32 %v1019, %v1020
        %v1022 = vand.u32 %v1021, 4294901760
        %1023 = vmatpush1.msra.mxu0 %v1022
        %1024 = vmatprep.subr.mxu0 0.0
        %v1025 = vand.u32 %v529, 4294901760
        %v1026 = vsub.f32 %v529, %v1025
        %v1027 = vand.u32 %v1026, 4294901760
        %v1028 = vsub.f32 %v1026, %v1027
        %v1029 = vand.u32 %v1028, 4294901760
        %1030 = vmatpush1.msra.mxu0 %v1029
        %1031 = vmatprep.subr.mxu0 0.0
        %v1032 = vand.u32 %v530, 4294901760
        %v1033 = vsub.f32 %v530, %v1032
        %v1034 = vand.u32 %v1033, 4294901760
        %v1035 = vsub.f32 %v1033, %v1034
        %v1036 = vand.u32 %v1035, 4294901760
        %1037 = vmatpush1.msra.mxu0 %v1036
        %1038 = vmatprep.subr.mxu0 0.0
        %v1039 = vand.u32 %v531, 4294901760
        %v1040 = vsub.f32 %v531, %v1039
        %v1041 = vand.u32 %v1040, 4294901760
        %v1042 = vsub.f32 %v1040, %v1041
        %v1043 = vand.u32 %v1042, 4294901760
        %1044 = vmatpush1.msra.mxu0 %v1043
        %1045 = vmatprep.subr.mxu0 0.0
        %v1046 = vand.u32 %v532, 4294901760
        %v1047 = vsub.f32 %v532, %v1046
        %v1048 = vand.u32 %v1047, 4294901760
        %v1049 = vsub.f32 %v1047, %v1048
        %v1050 = vand.u32 %v1049, 4294901760
        %1051 = vmatpush1.msra.mxu0 %v1050
        %1052 = vmatprep.subr.mxu0 0.0
        %v1053 = vand.u32 %v533, 4294901760
        %v1054 = vsub.f32 %v533, %v1053
        %v1055 = vand.u32 %v1054, 4294901760
        %v1056 = vsub.f32 %v1054, %v1055
        %v1057 = vand.u32 %v1056, 4294901760
        %1058 = vmatpush1.msra.mxu0 %v1057
        %1059 = vmatprep.subr.mxu0 0.0
        %v1060 = vand.u32 %v534, 4294901760
        %v1061 = vsub.f32 %v534, %v1060
        %v1062 = vand.u32 %v1061, 4294901760
        %v1063 = vsub.f32 %v1061, %v1062
        %v1064 = vand.u32 %v1063, 4294901760
        %1065 = vmatpush1.msra.mxu0 %v1064
        %1066 = vmatprep.subr.mxu0 0.0
        %1067 = vmatpush1.msra.mxu0 0.0
        %1068 = vmatprep.subr.mxu0 0.0
        %1069 = vmatpush1.msra.mxu0 0.0
        %1070 = vmatprep.subr.mxu0 0.0
        %1071 = vmatpush1.msra.mxu0 0.0
        %1072 = vmatprep.subr.mxu0 0.0
        %1073 = vmatpush1.msra.mxu0 0.0
        %1074 = vmatprep.subr.mxu0 0.0
        %1075 = vmatpush1.msra.mxu0 0.0
        %1076 = vmatprep.subr.mxu0 0.0
        %1077 = vmatpush1.msra.mxu0 0.0
        %1078 = vmatprep.subr.mxu0 0.0
        %1079 = vmatpush1.msra.mxu0 0.0
        %1080 = vmatprep.subr.mxu0 0.0
        %1081 = vmatpush1.msra.mxu0 0.0
        %1082 = vmatprep.subr.mxu0 0.0
        %1083 = vmatpush1.msra.mxu0 0.0
        %1084 = vmatprep.subr.mxu0 0.0
        %1085 = vmatpush1.msra.mxu0 0.0
        %1086 = vmatprep.subr.mxu0 0.0
        %1087 = vmatpush1.msra.mxu0 0.0
        %1088 = vmatprep.subr.mxu0 0.0
        %1089 = vmatpush1.msra.mxu0 0.0
        %1090 = vmatprep.subr.mxu0 0.0
        %1091 = vmatpush1.msra.mxu0 0.0
        %1092 = vmatprep.subr.mxu0 0.0
        %1093 = vmatpush1.msra.mxu0 0.0
        %1094 = vmatprep.subr.mxu0 0.0
        %1095 = vmatpush1.msra.mxu0 0.0
        %1096 = vmatprep.subr.mxu0 0.0
        %1097 = vmatpush1.msra.mxu0 0.0
        %1098 = vmatprep.subr.mxu0 0.0
        %1099 = vmatpush1.msra.mxu0 0.0
        %1100 = vmatprep.subr.mxu0 0.0
        %1101 = vmatpush1.msra.mxu0 0.0
        %1102 = vmatprep.subr.mxu0 0.0
        %1103 = vmatpush1.msra.mxu0 0.0
        %1104 = vmatprep.mubr.f32.mxu0 0.0
        %v1105 = vand.u32 %v690, 4294901760
        %1106 = vmatmul.mubr.f32.gmra.mrb[0].mxu0 %v1105
        %v1107 = vpop.f32.mrb[0].mxu0
        %v1108 = vadd.f32 %v822, %v1107
        %v1109 = vpop.f32.mrb[0].mxu0
        %1110 = vmatprep.mubr.f32.mxu0 0.0
        %v1111 = vand.u32 %v693, 4294901760
        %1112 = vmatmul.mubr.f32.gmra.mrb[0].mxu0 %v1111
        %v1113 = vpop.f32.mrb[0].mxu0
        %v1114 = vadd.f32 %v832, %v1113
        %v1115 = vpop.f32.mrb[0].mxu0
        %1116 = vmatprep.mubr.f32.mxu0 0.0
        %v1117 = vand.u32 %v696, 4294901760
        %1118 = vmatmul.mubr.f32.gmra.mrb[0].mxu0 %v1117
        %v1119 = vpop.f32.mrb[0].mxu0
        %v1120 = vadd.f32 %v842, %v1119
        %v1121 = vpop.f32.mrb[0].mxu0
        %1122 = vmatprep.mubr.f32.mxu0 0.0
        %v1123 = vand.u32 %v699, 4294901760
        %1124 = vmatmul.mubr.f32.gmra.mrb[0].mxu0 %v1123
        %v1125 = vpop.f32.mrb[0].mxu0
        %v1126 = vadd.f32 %v852, %v1125
        %v1127 = vpop.f32.mrb[0].mxu0
        %1128 = vmatprep.mubr.f32.mxu0 0.0
        %v1129 = vand.u32 %v702, 4294901760
        %1130 = vmatmul.mubr.f32.gmra.mrb[0].mxu0 %v1129
        %v1131 = vpop.f32.mrb[0].mxu0
        %v1132 = vadd.f32 %v862, %v1131
        %v1133 = vpop.f32.mrb[0].mxu0
        %1134 = vmatprep.mubr.f32.mxu0 0.0
        %v1135 = vand.u32 %v705, 4294901760
        %1136 = vmatmul.mubr.f32.gmra.mrb[0].mxu0 %v1135
        %v1137 = vpop.f32.mrb[0].mxu0
        %v1138 = vadd.f32 %v872, %v1137
        %v1139 = vpop.f32.mrb[0].mxu0
        %1140 = vmatprep.mubr.f32.mxu0 0.0
        %v1141 = vand.u32 %v708, 4294901760
        %1142 = vmatmul.mubr.f32.gmra.mrb[0].mxu0 %v1141
        %v1143 = vpop.f32.mrb[0].mxu0
        %v1144 = vadd.f32 %v882, %v1143
        %v1145 = vpop.f32.mrb[0].mxu0
        %1146 = vmatprep.mubr.f32.mxu0 0.0
        %v1147 = vand.u32 %v711, 4294901760
        %1148 = vmatmul.mubr.f32.gmra.mrb[0].mxu0 %v1147
        %v1149 = vpop.f32.mrb[0].mxu0
        %v1150 = vadd.f32 %v892, %v1149
        %v1151 = vpop.f32.mrb[0].mxu0
        %1152 = vmatprep.mubr.f32.mxu0 0.0
        %v1153 = vand.u32 %v714, 4294901760
        %1154 = vmatmul.mubr.f32.gmra.mrb[0].mxu0 %v1153
        %v1155 = vpop.f32.mrb[0].mxu0
        %v1156 = vadd.f32 %v902, %v1155
        %v1157 = vpop.f32.mrb[0].mxu0
        %1158 = vmatprep.mubr.f32.mxu0 0.0
        %v1159 = vand.u32 %v717, 4294901760
        %1160 = vmatmul.mubr.f32.gmra.mrb[0].mxu0 %v1159
        %v1161 = vpop.f32.mrb[0].mxu0
        %v1162 = vadd.f32 %v912, %v1161
        %v1163 = vpop.f32.mrb[0].mxu0
        %1164 = vmatprep.mubr.f32.mxu0 0.0
        %v1165 = vand.u32 %v720, 4294901760
        %1166 = vmatmul.mubr.f32.gmra.mrb[0].mxu0 %v1165
        %v1167 = vpop.f32.mrb[0].mxu0
        %v1168 = vadd.f32 %v922, %v1167
        %v1169 = vpop.f32.mrb[0].mxu0
        %1170 = vmatprep.mubr.f32.mxu0 0.0
        %v1171 = vand.u32 %v723, 4294901760
        %1172 = vmatmul.mubr.f32.gmra.mrb[0].mxu0 %v1171
        %v1173 = vpop.f32.mrb[0].mxu0
        %v1174 = vadd.f32 %v932, %v1173
        %v1175 = vpop.f32.mrb[0].mxu0
        %1176 = vmatprep.mubr.f32.mxu0 0.0
        %v1177 = vand.u32 %v726, 4294901760
        %1178 = vmatmul.mubr.f32.gmra.mrb[0].mxu0 %v1177
        %v1179 = vpop.f32.mrb[0].mxu0
        %v1180 = vadd.f32 %v942, %v1179
        %v1181 = vpop.f32.mrb[0].mxu0
        %1182 = vmatprep.mubr.f32.mxu0 0.0
        %v1183 = vand.u32 %v729, 4294901760
        %1184 = vmatmul.mubr.f32.gmra.mrb[0].mxu0 %v1183
        %v1185 = vpop.f32.mrb[0].mxu0
        %v1186 = vadd.f32 %v952, %v1185
        %v1187 = vpop.f32.mrb[0].mxu0
        %1188 = vmatprep.mubr.f32.mxu0 0.0
        %v1189 = vand.u32 %v732, 4294901760
        %1190 = vmatmul.mubr.f32.gmra.mrb[0].mxu0 %v1189
        %v1191 = vpop.f32.mrb[0].mxu0
        %v1192 = vadd.f32 %v962, %v1191
        %v1193 = vpop.f32.mrb[0].mxu0
        %1194 = vmatprep.mubr.f32.mxu0 0.0
        %v1195 = vand.u32 %v735, 4294901760
        %1196 = vmatmul.mubr.f32.gmra.mrb[0].mxu0 %v1195
        %v1197 = vpop.f32.mrb[0].mxu0
        %v1198 = vadd.f32 %v972, %v1197
        %v1199 = vpop.f32.mrb[0].mxu0
        %1200 = vdwg.mxu0
        %1201 = vmatprep.subr.mxu0 0.0
        %v1202 = vand.u32 %v522, 4294901760
        %v1203 = vsub.f32 %v522, %v1202
        %1204 = vmatpush1.msra.mxu0 %v1203
        %1205 = vmatprep.subr.mxu0 0.0
        %v1206 = vand.u32 %v523, 4294901760
        %v1207 = vsub.f32 %v523, %v1206
        %1208 = vmatpush1.msra.mxu0 %v1207
        %1209 = vmatprep.subr.mxu0 0.0
        %v1210 = vand.u32 %v524, 4294901760
        %v1211 = vsub.f32 %v524, %v1210
        %1212 = vmatpush1.msra.mxu0 %v1211
        %1213 = vmatprep.subr.mxu0 0.0
        %v1214 = vand.u32 %v525, 4294901760
        %v1215 = vsub.f32 %v525, %v1214
        %1216 = vmatpush1.msra.mxu0 %v1215
        %1217 = vmatprep.subr.mxu0 0.0
        %v1218 = vand.u32 %v526, 4294901760
        %v1219 = vsub.f32 %v526, %v1218
        %1220 = vmatpush1.msra.mxu0 %v1219
        %1221 = vmatprep.subr.mxu0 0.0
        %v1222 = vand.u32 %v527, 4294901760
        %v1223 = vsub.f32 %v527, %v1222
        %1224 = vmatpush1.msra.mxu0 %v1223
        %1225 = vmatprep.subr.mxu0 0.0
        %v1226 = vand.u32 %v528, 4294901760
        %v1227 = vsub.f32 %v528, %v1226
        %1228 = vmatpush1.msra.mxu0 %v1227
        %1229 = vmatprep.subr.mxu0 0.0
        %v1230 = vand.u32 %v529, 4294901760
        %v1231 = vsub.f32 %v529, %v1230
        %1232 = vmatpush1.msra.mxu0 %v1231
        %1233 = vmatprep.subr.mxu0 0.0
        %v1234 = vand.u32 %v530, 4294901760
        %v1235 = vsub.f32 %v530, %v1234
        %1236 = vmatpush1.msra.mxu0 %v1235
        %1237 = vmatprep.subr.mxu0 0.0
        %v1238 = vand.u32 %v531, 4294901760
        %v1239 = vsub.f32 %v531, %v1238
        %1240 = vmatpush1.msra.mxu0 %v1239
        %1241 = vmatprep.subr.mxu0 0.0
        %v1242 = vand.u32 %v532, 4294901760
        %v1243 = vsub.f32 %v532, %v1242
        %1244 = vmatpush1.msra.mxu0 %v1243
        %1245 = vmatprep.subr.mxu0 0.0
        %v1246 = vand.u32 %v533, 4294901760
        %v1247 = vsub.f32 %v533, %v1246
        %1248 = vmatpush1.msra.mxu0 %v1247
        %1249 = vmatprep.subr.mxu0 0.0
        %v1250 = vand.u32 %v534, 4294901760
        %v1251 = vsub.f32 %v534, %v1250
        %1252 = vmatpush1.msra.mxu0 %v1251
        %1253 = vmatprep.subr.mxu0 0.0
        %1254 = vmatpush1.msra.mxu0 0.0
        %1255 = vmatprep.subr.mxu0 0.0
        %1256 = vmatpush1.msra.mxu0 0.0
        %1257 = vmatprep.subr.mxu0 0.0
        %1258 = vmatpush1.msra.mxu0 0.0
        %1259 = vmatprep.subr.mxu0 0.0
        %1260 = vmatpush1.msra.mxu0 0.0
        %1261 = vmatprep.subr.mxu0 0.0
        %1262 = vmatpush1.msra.mxu0 0.0
        %1263 = vmatprep.subr.mxu0 0.0
        %1264 = vmatpush1.msra.mxu0 0.0
        %1265 = vmatprep.subr.mxu0 0.0
        %1266 = vmatpush1.msra.mxu0 0.0
        %1267 = vmatprep.subr.mxu0 0.0
        %1268 = vmatpush1.msra.mxu0 0.0
        %1269 = vmatprep.subr.mxu0 0.0
        %1270 = vmatpush1.msra.mxu0 0.0
        %1271 = vmatprep.subr.mxu0 0.0
        %1272 = vmatpush1.msra.mxu0 0.0
        %1273 = vmatprep.subr.mxu0 0.0
        %1274 = vmatpush1.msra.mxu0 0.0
        %1275 = vmatprep.subr.mxu0 0.0
        %1276 = vmatpush1.msra.mxu0 0.0
        %1277 = vmatprep.subr.mxu0 0.0
        %1278 = vmatpush1.msra.mxu0 0.0
        %1279 = vmatprep.subr.mxu0 0.0
        %1280 = vmatpush1.msra.mxu0 0.0
        %1281 = vmatprep.subr.mxu0 0.0
        %1282 = vmatpush1.msra.mxu0 0.0
        %1283 = vmatprep.subr.mxu0 0.0
        %1284 = vmatpush1.msra.mxu0 0.0
        %1285 = vmatprep.subr.mxu0 0.0
        %1286 = vmatpush1.msra.mxu0 0.0
        %1287 = vmatprep.subr.mxu0 0.0
        %1288 = vmatpush1.msra.mxu0 0.0
        %1289 = vmatprep.subr.mxu0 0.0
        %1290 = vmatpush1.msra.mxu0 0.0
        %1291 = vmatprep.mubr.f32.mxu0 0.0
        %v1292 = vand.u32 %v690, 4294901760
        %v1293 = vsub.f32 %v690, %v1292
        %1294 = vmatmul.mubr.f32.gmra.mrb[0].mxu0 %v1293
        %v1295 = vpop.f32.mrb[0].mxu0
        %v1296 = vadd.f32 %v1108, %v1295
        %v1297 = vpop.f32.mrb[0].mxu0
        %1298 = vmatprep.mubr.f32.mxu0 0.0
        %v1299 = vand.u32 %v693, 4294901760
        %v1300 = vsub.f32 %v693, %v1299
        %1301 = vmatmul.mubr.f32.gmra.mrb[0].mxu0 %v1300
        %v1302 = vpop.f32.mrb[0].mxu0
        %v1303 = vadd.f32 %v1114, %v1302
        %v1304 = vpop.f32.mrb[0].mxu0
        %1305 = vmatprep.mubr.f32.mxu0 0.0
        %v1306 = vand.u32 %v696, 4294901760
        %v1307 = vsub.f32 %v696, %v1306
        %1308 = vmatmul.mubr.f32.gmra.mrb[0].mxu0 %v1307
        %v1309 = vpop.f32.mrb[0].mxu0
        %v1310 = vadd.f32 %v1120, %v1309
        %v1311 = vpop.f32.mrb[0].mxu0
        %1312 = vmatprep.mubr.f32.mxu0 0.0
        %v1313 = vand.u32 %v699, 4294901760
        %v1314 = vsub.f32 %v699, %v1313
        %1315 = vmatmul.mubr.f32.gmra.mrb[0].mxu0 %v1314
        %v1316 = vpop.f32.mrb[0].mxu0
        %v1317 = vadd.f32 %v1126, %v1316
        %v1318 = vpop.f32.mrb[0].mxu0
        %1319 = vmatprep.mubr.f32.mxu0 0.0
        %v1320 = vand.u32 %v702, 4294901760
        %v1321 = vsub.f32 %v702, %v1320
        %1322 = vmatmul.mubr.f32.gmra.mrb[0].mxu0 %v1321
        %v1323 = vpop.f32.mrb[0].mxu0
        %v1324 = vadd.f32 %v1132, %v1323
        %v1325 = vpop.f32.mrb[0].mxu0
        %1326 = vmatprep.mubr.f32.mxu0 0.0
        %v1327 = vand.u32 %v705, 4294901760
        %v1328 = vsub.f32 %v705, %v1327
        %1329 = vmatmul.mubr.f32.gmra.mrb[0].mxu0 %v1328
        %v1330 = vpop.f32.mrb[0].mxu0
        %v1331 = vadd.f32 %v1138, %v1330
        %v1332 = vpop.f32.mrb[0].mxu0
        %1333 = vmatprep.mubr.f32.mxu0 0.0
        %v1334 = vand.u32 %v708, 4294901760
        %v1335 = vsub.f32 %v708, %v1334
        %1336 = vmatmul.mubr.f32.gmra.mrb[0].mxu0 %v1335
        %v1337 = vpop.f32.mrb[0].mxu0
        %v1338 = vadd.f32 %v1144, %v1337
        %v1339 = vpop.f32.mrb[0].mxu0
        %1340 = vmatprep.mubr.f32.mxu0 0.0
        %v1341 = vand.u32 %v711, 4294901760
        %v1342 = vsub.f32 %v711, %v1341
        %1343 = vmatmul.mubr.f32.gmra.mrb[0].mxu0 %v1342
        %v1344 = vpop.f32.mrb[0].mxu0
        %v1345 = vadd.f32 %v1150, %v1344
        %v1346 = vpop.f32.mrb[0].mxu0
        %1347 = vmatprep.mubr.f32.mxu0 0.0
        %v1348 = vand.u32 %v714, 4294901760
        %v1349 = vsub.f32 %v714, %v1348
        %1350 = vmatmul.mubr.f32.gmra.mrb[0].mxu0 %v1349
        %v1351 = vpop.f32.mrb[0].mxu0
        %v1352 = vadd.f32 %v1156, %v1351
        %v1353 = vpop.f32.mrb[0].mxu0
        %1354 = vmatprep.mubr.f32.mxu0 0.0
        %v1355 = vand.u32 %v717, 4294901760
        %v1356 = vsub.f32 %v717, %v1355
        %1357 = vmatmul.mubr.f32.gmra.mrb[0].mxu0 %v1356
        %v1358 = vpop.f32.mrb[0].mxu0
        %v1359 = vadd.f32 %v1162, %v1358
        %v1360 = vpop.f32.mrb[0].mxu0
        %1361 = vmatprep.mubr.f32.mxu0 0.0
        %v1362 = vand.u32 %v720, 4294901760
        %v1363 = vsub.f32 %v720, %v1362
        %1364 = vmatmul.mubr.f32.gmra.mrb[0].mxu0 %v1363
        %v1365 = vpop.f32.mrb[0].mxu0
        %v1366 = vadd.f32 %v1168, %v1365
        %v1367 = vpop.f32.mrb[0].mxu0
        %1368 = vmatprep.mubr.f32.mxu0 0.0
        %v1369 = vand.u32 %v723, 4294901760
        %v1370 = vsub.f32 %v723, %v1369
        %1371 = vmatmul.mubr.f32.gmra.mrb[0].mxu0 %v1370
        %v1372 = vpop.f32.mrb[0].mxu0
        %v1373 = vadd.f32 %v1174, %v1372
        %v1374 = vpop.f32.mrb[0].mxu0
        %1375 = vmatprep.mubr.f32.mxu0 0.0
        %v1376 = vand.u32 %v726, 4294901760
        %v1377 = vsub.f32 %v726, %v1376
        %1378 = vmatmul.mubr.f32.gmra.mrb[0].mxu0 %v1377
        %v1379 = vpop.f32.mrb[0].mxu0
        %v1380 = vadd.f32 %v1180, %v1379
        %v1381 = vpop.f32.mrb[0].mxu0
        %1382 = vmatprep.mubr.f32.mxu0 0.0
        %v1383 = vand.u32 %v729, 4294901760
        %v1384 = vsub.f32 %v729, %v1383
        %1385 = vmatmul.mubr.f32.gmra.mrb[0].mxu0 %v1384
        %v1386 = vpop.f32.mrb[0].mxu0
        %v1387 = vadd.f32 %v1186, %v1386
        %v1388 = vpop.f32.mrb[0].mxu0
        %1389 = vmatprep.mubr.f32.mxu0 0.0
        %v1390 = vand.u32 %v732, 4294901760
        %v1391 = vsub.f32 %v732, %v1390
        %1392 = vmatmul.mubr.f32.gmra.mrb[0].mxu0 %v1391
        %v1393 = vpop.f32.mrb[0].mxu0
        %v1394 = vadd.f32 %v1192, %v1393
        %v1395 = vpop.f32.mrb[0].mxu0
        %1396 = vmatprep.mubr.f32.mxu0 0.0
        %v1397 = vand.u32 %v735, 4294901760
        %v1398 = vsub.f32 %v735, %v1397
        %1399 = vmatmul.mubr.f32.gmra.mrb[0].mxu0 %v1398
        %v1400 = vpop.f32.mrb[0].mxu0
        %v1401 = vadd.f32 %v1198, %v1400
        %v1402 = vpop.f32.mrb[0].mxu0
        %1403 = vdwg.mxu0
        %1404 = vmatprep.subr.mxu0 0.0
        %v1405 = vand.u32 %v522, 4294901760
        %1406 = vmatpush1.msra.mxu0 %v1405
        %1407 = vmatprep.subr.mxu0 0.0
        %v1408 = vand.u32 %v523, 4294901760
        %1409 = vmatpush1.msra.mxu0 %v1408
        %1410 = vmatprep.subr.mxu0 0.0
        %v1411 = vand.u32 %v524, 4294901760
        %1412 = vmatpush1.msra.mxu0 %v1411
        %1413 = vmatprep.subr.mxu0 0.0
        %v1414 = vand.u32 %v525, 4294901760
        %1415 = vmatpush1.msra.mxu0 %v1414
        %1416 = vmatprep.subr.mxu0 0.0
        %v1417 = vand.u32 %v526, 4294901760
        %1418 = vmatpush1.msra.mxu0 %v1417
        %1419 = vmatprep.subr.mxu0 0.0
        %v1420 = vand.u32 %v527, 4294901760
        %1421 = vmatpush1.msra.mxu0 %v1420
        %1422 = vmatprep.subr.mxu0 0.0
        %v1423 = vand.u32 %v528, 4294901760
        %1424 = vmatpush1.msra.mxu0 %v1423
        %1425 = vmatprep.subr.mxu0 0.0
        %v1426 = vand.u32 %v529, 4294901760
        %1427 = vmatpush1.msra.mxu0 %v1426
        %1428 = vmatprep.subr.mxu0 0.0
        %v1429 = vand.u32 %v530, 4294901760
        %1430 = vmatpush1.msra.mxu0 %v1429
        %1431 = vmatprep.subr.mxu0 0.0
        %v1432 = vand.u32 %v531, 4294901760
        %1433 = vmatpush1.msra.mxu0 %v1432
        %1434 = vmatprep.subr.mxu0 0.0
        %v1435 = vand.u32 %v532, 4294901760
        %1436 = vmatpush1.msra.mxu0 %v1435
        %1437 = vmatprep.subr.mxu0 0.0
        %v1438 = vand.u32 %v533, 4294901760
        %1439 = vmatpush1.msra.mxu0 %v1438
        %1440 = vmatprep.subr.mxu0 0.0
        %v1441 = vand.u32 %v534, 4294901760
        %1442 = vmatpush1.msra.mxu0 %v1441
        %1443 = vmatprep.subr.mxu0 0.0
        %1444 = vmatpush1.msra.mxu0 0.0
        %1445 = vmatprep.subr.mxu0 0.0
        %1446 = vmatpush1.msra.mxu0 0.0
        %1447 = vmatprep.subr.mxu0 0.0
        %1448 = vmatpush1.msra.mxu0 0.0
        %1449 = vmatprep.subr.mxu0 0.0
        %1450 = vmatpush1.msra.mxu0 0.0
        %1451 = vmatprep.subr.mxu0 0.0
        %1452 = vmatpush1.msra.mxu0 0.0
        %1453 = vmatprep.subr.mxu0 0.0
        %1454 = vmatpush1.msra.mxu0 0.0
        %1455 = vmatprep.subr.mxu0 0.0
        %1456 = vmatpush1.msra.mxu0 0.0
        %1457 = vmatprep.subr.mxu0 0.0
        %1458 = vmatpush1.msra.mxu0 0.0
        %1459 = vmatprep.subr.mxu0 0.0
        %1460 = vmatpush1.msra.mxu0 0.0
        %1461 = vmatprep.subr.mxu0 0.0
        %1462 = vmatpush1.msra.mxu0 0.0
        %1463 = vmatprep.subr.mxu0 0.0
        %1464 = vmatpush1.msra.mxu0 0.0
        %1465 = vmatprep.subr.mxu0 0.0
        %1466 = vmatpush1.msra.mxu0 0.0
        %1467 = vmatprep.subr.mxu0 0.0
        %1468 = vmatpush1.msra.mxu0 0.0
        %1469 = vmatprep.subr.mxu0 0.0
        %1470 = vmatpush1.msra.mxu0 0.0
        %1471 = vmatprep.subr.mxu0 0.0
        %1472 = vmatpush1.msra.mxu0 0.0
        %1473 = vmatprep.subr.mxu0 0.0
        %1474 = vmatpush1.msra.mxu0 0.0
        %1475 = vmatprep.subr.mxu0 0.0
        %1476 = vmatpush1.msra.mxu0 0.0
        %1477 = vmatprep.subr.mxu0 0.0
        %1478 = vmatpush1.msra.mxu0 0.0
        %1479 = vmatprep.subr.mxu0 0.0
        %1480 = vmatpush1.msra.mxu0 0.0
        %1481 = vmatprep.mubr.f32.mxu0 0.0
        %v1482 = vand.u32 %v690, 4294901760
        %v1483 = vsub.f32 %v690, %v1482
        %v1484 = vand.u32 %v1483, 4294901760
        %1485 = vmatmul.mubr.f32.gmra.mrb[0].mxu0 %v1484
        %v1486 = vpop.f32.mrb[0].mxu0
        %v1487 = vadd.f32 %v1296, %v1486
        %v1488 = vpop.f32.mrb[0].mxu0
        %1489 = vmatprep.mubr.f32.mxu0 0.0
        %v1490 = vand.u32 %v693, 4294901760
        %v1491 = vsub.f32 %v693, %v1490
        %v1492 = vand.u32 %v1491, 4294901760
        %1493 = vmatmul.mubr.f32.gmra.mrb[0].mxu0 %v1492
        %v1494 = vpop.f32.mrb[0].mxu0
        %v1495 = vadd.f32 %v1303, %v1494
        %v1496 = vpop.f32.mrb[0].mxu0
        %1497 = vmatprep.mubr.f32.mxu0 0.0
        %v1498 = vand.u32 %v696, 4294901760
        %v1499 = vsub.f32 %v696, %v1498
        %v1500 = vand.u32 %v1499, 4294901760
        %1501 = vmatmul.mubr.f32.gmra.mrb[0].mxu0 %v1500
        %v1502 = vpop.f32.mrb[0].mxu0
        %v1503 = vadd.f32 %v1310, %v1502
        %v1504 = vpop.f32.mrb[0].mxu0
        %1505 = vmatprep.mubr.f32.mxu0 0.0
        %v1506 = vand.u32 %v699, 4294901760
        %v1507 = vsub.f32 %v699, %v1506
        %v1508 = vand.u32 %v1507, 4294901760
        %1509 = vmatmul.mubr.f32.gmra.mrb[0].mxu0 %v1508
        %v1510 = vpop.f32.mrb[0].mxu0
        %v1511 = vadd.f32 %v1317, %v1510
        %v1512 = vpop.f32.mrb[0].mxu0
        %1513 = vmatprep.mubr.f32.mxu0 0.0
        %v1514 = vand.u32 %v702, 4294901760
        %v1515 = vsub.f32 %v702, %v1514
        %v1516 = vand.u32 %v1515, 4294901760
        %1517 = vmatmul.mubr.f32.gmra.mrb[0].mxu0 %v1516
        %v1518 = vpop.f32.mrb[0].mxu0
        %v1519 = vadd.f32 %v1324, %v1518
        %v1520 = vpop.f32.mrb[0].mxu0
        %1521 = vmatprep.mubr.f32.mxu0 0.0
        %v1522 = vand.u32 %v705, 4294901760
        %v1523 = vsub.f32 %v705, %v1522
        %v1524 = vand.u32 %v1523, 4294901760
        %1525 = vmatmul.mubr.f32.gmra.mrb[0].mxu0 %v1524
        %v1526 = vpop.f32.mrb[0].mxu0
        %v1527 = vadd.f32 %v1331, %v1526
        %v1528 = vpop.f32.mrb[0].mxu0
        %1529 = vmatprep.mubr.f32.mxu0 0.0
        %v1530 = vand.u32 %v708, 4294901760
        %v1531 = vsub.f32 %v708, %v1530
        %v1532 = vand.u32 %v1531, 4294901760
        %1533 = vmatmul.mubr.f32.gmra.mrb[0].mxu0 %v1532
        %v1534 = vpop.f32.mrb[0].mxu0
        %v1535 = vadd.f32 %v1338, %v1534
        %v1536 = vpop.f32.mrb[0].mxu0
        %1537 = vmatprep.mubr.f32.mxu0 0.0
        %v1538 = vand.u32 %v711, 4294901760
        %v1539 = vsub.f32 %v711, %v1538
        %v1540 = vand.u32 %v1539, 4294901760
        %1541 = vmatmul.mubr.f32.gmra.mrb[0].mxu0 %v1540
        %v1542 = vpop.f32.mrb[0].mxu0
        %v1543 = vadd.f32 %v1345, %v1542
        %v1544 = vpop.f32.mrb[0].mxu0
        %1545 = vmatprep.mubr.f32.mxu0 0.0
        %v1546 = vand.u32 %v714, 4294901760
        %v1547 = vsub.f32 %v714, %v1546
        %v1548 = vand.u32 %v1547, 4294901760
        %1549 = vmatmul.mubr.f32.gmra.mrb[0].mxu0 %v1548
        %v1550 = vpop.f32.mrb[0].mxu0
        %v1551 = vadd.f32 %v1352, %v1550
        %v1552 = vpop.f32.mrb[0].mxu0
        %1553 = vmatprep.mubr.f32.mxu0 0.0
        %v1554 = vand.u32 %v717, 4294901760
        %v1555 = vsub.f32 %v717, %v1554
        %v1556 = vand.u32 %v1555, 4294901760
        %1557 = vmatmul.mubr.f32.gmra.mrb[0].mxu0 %v1556
        %v1558 = vpop.f32.mrb[0].mxu0
        %v1559 = vadd.f32 %v1359, %v1558
        %v1560 = vpop.f32.mrb[0].mxu0
        %1561 = vmatprep.mubr.f32.mxu0 0.0
        %v1562 = vand.u32 %v720, 4294901760
        %v1563 = vsub.f32 %v720, %v1562
        %v1564 = vand.u32 %v1563, 4294901760
        %1565 = vmatmul.mubr.f32.gmra.mrb[0].mxu0 %v1564
        %v1566 = vpop.f32.mrb[0].mxu0
        %v1567 = vadd.f32 %v1366, %v1566
        %v1568 = vpop.f32.mrb[0].mxu0
        %1569 = vmatprep.mubr.f32.mxu0 0.0
        %v1570 = vand.u32 %v723, 4294901760
        %v1571 = vsub.f32 %v723, %v1570
        %v1572 = vand.u32 %v1571, 4294901760
        %1573 = vmatmul.mubr.f32.gmra.mrb[0].mxu0 %v1572
        %v1574 = vpop.f32.mrb[0].mxu0
        %v1575 = vadd.f32 %v1373, %v1574
        %v1576 = vpop.f32.mrb[0].mxu0
        %1577 = vmatprep.mubr.f32.mxu0 0.0
        %v1578 = vand.u32 %v726, 4294901760
        %v1579 = vsub.f32 %v726, %v1578
        %v1580 = vand.u32 %v1579, 4294901760
        %1581 = vmatmul.mubr.f32.gmra.mrb[0].mxu0 %v1580
        %v1582 = vpop.f32.mrb[0].mxu0
        %v1583 = vadd.f32 %v1380, %v1582
        %v1584 = vpop.f32.mrb[0].mxu0
        %1585 = vmatprep.mubr.f32.mxu0 0.0
        %v1586 = vand.u32 %v729, 4294901760
        %v1587 = vsub.f32 %v729, %v1586
        %v1588 = vand.u32 %v1587, 4294901760
        %1589 = vmatmul.mubr.f32.gmra.mrb[0].mxu0 %v1588
        %v1590 = vpop.f32.mrb[0].mxu0
        %v1591 = vadd.f32 %v1387, %v1590
        %v1592 = vpop.f32.mrb[0].mxu0
        %1593 = vmatprep.mubr.f32.mxu0 0.0
        %v1594 = vand.u32 %v732, 4294901760
        %v1595 = vsub.f32 %v732, %v1594
        %v1596 = vand.u32 %v1595, 4294901760
        %1597 = vmatmul.mubr.f32.gmra.mrb[0].mxu0 %v1596
        %v1598 = vpop.f32.mrb[0].mxu0
        %v1599 = vadd.f32 %v1394, %v1598
        %v1600 = vpop.f32.mrb[0].mxu0
        %1601 = vmatprep.mubr.f32.mxu0 0.0
        %v1602 = vand.u32 %v735, 4294901760
        %v1603 = vsub.f32 %v735, %v1602
        %v1604 = vand.u32 %v1603, 4294901760
        %1605 = vmatmul.mubr.f32.gmra.mrb[0].mxu0 %v1604
        %v1606 = vpop.f32.mrb[0].mxu0
        %v1607 = vadd.f32 %v1401, %v1606
        %v1608 = vpop.f32.mrb[0].mxu0
        %1609 = vdwg.mxu0
        %1610 = vmatprep.subr.mxu0 0.0
        %v1611 = vand.u32 %v522, 4294901760
        %v1612 = vsub.f32 %v522, %v1611
        %v1613 = vand.u32 %v1612, 4294901760
        %1614 = vmatpush1.msra.mxu0 %v1613
        %1615 = vmatprep.subr.mxu0 0.0
        %v1616 = vand.u32 %v523, 4294901760
        %v1617 = vsub.f32 %v523, %v1616
        %v1618 = vand.u32 %v1617, 4294901760
        %1619 = vmatpush1.msra.mxu0 %v1618
        %1620 = vmatprep.subr.mxu0 0.0
        %v1621 = vand.u32 %v524, 4294901760
        %v1622 = vsub.f32 %v524, %v1621
        %v1623 = vand.u32 %v1622, 4294901760
        %1624 = vmatpush1.msra.mxu0 %v1623
        %1625 = vmatprep.subr.mxu0 0.0
        %v1626 = vand.u32 %v525, 4294901760
        %v1627 = vsub.f32 %v525, %v1626
        %v1628 = vand.u32 %v1627, 4294901760
        %1629 = vmatpush1.msra.mxu0 %v1628
        %1630 = vmatprep.subr.mxu0 0.0
        %v1631 = vand.u32 %v526, 4294901760
        %v1632 = vsub.f32 %v526, %v1631
        %v1633 = vand.u32 %v1632, 4294901760
        %1634 = vmatpush1.msra.mxu0 %v1633
        %1635 = vmatprep.subr.mxu0 0.0
        %v1636 = vand.u32 %v527, 4294901760
        %v1637 = vsub.f32 %v527, %v1636
        %v1638 = vand.u32 %v1637, 4294901760
        %1639 = vmatpush1.msra.mxu0 %v1638
        %1640 = vmatprep.subr.mxu0 0.0
        %v1641 = vand.u32 %v528, 4294901760
        %v1642 = vsub.f32 %v528, %v1641
        %v1643 = vand.u32 %v1642, 4294901760
        %1644 = vmatpush1.msra.mxu0 %v1643
        %1645 = vmatprep.subr.mxu0 0.0
        %v1646 = vand.u32 %v529, 4294901760
        %v1647 = vsub.f32 %v529, %v1646
        %v1648 = vand.u32 %v1647, 4294901760
        %1649 = vmatpush1.msra.mxu0 %v1648
        %1650 = vmatprep.subr.mxu0 0.0
        %v1651 = vand.u32 %v530, 4294901760
        %v1652 = vsub.f32 %v530, %v1651
        %v1653 = vand.u32 %v1652, 4294901760
        %1654 = vmatpush1.msra.mxu0 %v1653
        %1655 = vmatprep.subr.mxu0 0.0
        %v1656 = vand.u32 %v531, 4294901760
        %v1657 = vsub.f32 %v531, %v1656
        %v1658 = vand.u32 %v1657, 4294901760
        %1659 = vmatpush1.msra.mxu0 %v1658
        %1660 = vmatprep.subr.mxu0 0.0
        %v1661 = vand.u32 %v532, 4294901760
        %v1662 = vsub.f32 %v532, %v1661
        %v1663 = vand.u32 %v1662, 4294901760
        %1664 = vmatpush1.msra.mxu0 %v1663
        %1665 = vmatprep.subr.mxu0 0.0
        %v1666 = vand.u32 %v533, 4294901760
        %v1667 = vsub.f32 %v533, %v1666
        %v1668 = vand.u32 %v1667, 4294901760
        %1669 = vmatpush1.msra.mxu0 %v1668
        %1670 = vmatprep.subr.mxu0 0.0
        %v1671 = vand.u32 %v534, 4294901760
        %v1672 = vsub.f32 %v534, %v1671
        %v1673 = vand.u32 %v1672, 4294901760
        %1674 = vmatpush1.msra.mxu0 %v1673
        %1675 = vmatprep.subr.mxu0 0.0
        %1676 = vmatpush1.msra.mxu0 0.0
        %1677 = vmatprep.subr.mxu0 0.0
        %1678 = vmatpush1.msra.mxu0 0.0
        %1679 = vmatprep.subr.mxu0 0.0
        %1680 = vmatpush1.msra.mxu0 0.0
        %1681 = vmatprep.subr.mxu0 0.0
        %1682 = vmatpush1.msra.mxu0 0.0
        %1683 = vmatprep.subr.mxu0 0.0
        %1684 = vmatpush1.msra.mxu0 0.0
        %1685 = vmatprep.subr.mxu0 0.0
        %1686 = vmatpush1.msra.mxu0 0.0
        %1687 = vmatprep.subr.mxu0 0.0
        %1688 = vmatpush1.msra.mxu0 0.0
        %1689 = vmatprep.subr.mxu0 0.0
        %1690 = vmatpush1.msra.mxu0 0.0
        %1691 = vmatprep.subr.mxu0 0.0
        %1692 = vmatpush1.msra.mxu0 0.0
        %1693 = vmatprep.subr.mxu0 0.0
        %1694 = vmatpush1.msra.mxu0 0.0
        %1695 = vmatprep.subr.mxu0 0.0
        %1696 = vmatpush1.msra.mxu0 0.0
        %1697 = vmatprep.subr.mxu0 0.0
        %1698 = vmatpush1.msra.mxu0 0.0
        %1699 = vmatprep.subr.mxu0 0.0
        %1700 = vmatpush1.msra.mxu0 0.0
        %1701 = vmatprep.subr.mxu0 0.0
        %1702 = vmatpush1.msra.mxu0 0.0
        %1703 = vmatprep.subr.mxu0 0.0
        %1704 = vmatpush1.msra.mxu0 0.0
        %1705 = vmatprep.subr.mxu0 0.0
        %1706 = vmatpush1.msra.mxu0 0.0
        %1707 = vmatprep.subr.mxu0 0.0
        %1708 = vmatpush1.msra.mxu0 0.0
        %1709 = vmatprep.subr.mxu0 0.0
        %1710 = vmatpush1.msra.mxu0 0.0
        %1711 = vmatprep.subr.mxu0 0.0
        %1712 = vmatpush1.msra.mxu0 0.0
        %1713 = vmatprep.mubr.f32.mxu0 0.0
        %v1714 = vand.u32 %v690, 4294901760
        %1715 = vmatmul.mubr.f32.gmra.mrb[0].mxu0 %v1714
        %v1716 = vpop.f32.mrb[0].mxu0
        %v1717 = vadd.f32 %v1487, %v1716
        %v1718 = vpop.f32.mrb[0].mxu0
        %1719 = vmatprep.mubr.f32.mxu0 0.0
        %v1720 = vand.u32 %v693, 4294901760
        %1721 = vmatmul.mubr.f32.gmra.mrb[0].mxu0 %v1720
        %v1722 = vpop.f32.mrb[0].mxu0
        %v1723 = vadd.f32 %v1495, %v1722
        %v1724 = vpop.f32.mrb[0].mxu0
        %1725 = vmatprep.mubr.f32.mxu0 0.0
        %v1726 = vand.u32 %v696, 4294901760
        %1727 = vmatmul.mubr.f32.gmra.mrb[0].mxu0 %v1726
        %v1728 = vpop.f32.mrb[0].mxu0
        %v1729 = vadd.f32 %v1503, %v1728
        %v1730 = vpop.f32.mrb[0].mxu0
        %1731 = vmatprep.mubr.f32.mxu0 0.0
        %v1732 = vand.u32 %v699, 4294901760
        %1733 = vmatmul.mubr.f32.gmra.mrb[0].mxu0 %v1732
        %v1734 = vpop.f32.mrb[0].mxu0
        %v1735 = vadd.f32 %v1511, %v1734
        %v1736 = vpop.f32.mrb[0].mxu0
        %1737 = vmatprep.mubr.f32.mxu0 0.0
        %v1738 = vand.u32 %v702, 4294901760
        %1739 = vmatmul.mubr.f32.gmra.mrb[0].mxu0 %v1738
        %v1740 = vpop.f32.mrb[0].mxu0
        %v1741 = vadd.f32 %v1519, %v1740
        %v1742 = vpop.f32.mrb[0].mxu0
        %1743 = vmatprep.mubr.f32.mxu0 0.0
        %v1744 = vand.u32 %v705, 4294901760
        %1745 = vmatmul.mubr.f32.gmra.mrb[0].mxu0 %v1744
        %v1746 = vpop.f32.mrb[0].mxu0
        %v1747 = vadd.f32 %v1527, %v1746
        %v1748 = vpop.f32.mrb[0].mxu0
        %1749 = vmatprep.mubr.f32.mxu0 0.0
        %v1750 = vand.u32 %v708, 4294901760
        %1751 = vmatmul.mubr.f32.gmra.mrb[0].mxu0 %v1750
        %v1752 = vpop.f32.mrb[0].mxu0
        %v1753 = vadd.f32 %v1535, %v1752
        %v1754 = vpop.f32.mrb[0].mxu0
        %1755 = vmatprep.mubr.f32.mxu0 0.0
        %v1756 = vand.u32 %v711, 4294901760
        %1757 = vmatmul.mubr.f32.gmra.mrb[0].mxu0 %v1756
        %v1758 = vpop.f32.mrb[0].mxu0
        %v1759 = vadd.f32 %v1543, %v1758
        %v1760 = vpop.f32.mrb[0].mxu0
        %1761 = vmatprep.mubr.f32.mxu0 0.0
        %v1762 = vand.u32 %v714, 4294901760
        %1763 = vmatmul.mubr.f32.gmra.mrb[0].mxu0 %v1762
        %v1764 = vpop.f32.mrb[0].mxu0
        %v1765 = vadd.f32 %v1551, %v1764
        %v1766 = vpop.f32.mrb[0].mxu0
        %1767 = vmatprep.mubr.f32.mxu0 0.0
        %v1768 = vand.u32 %v717, 4294901760
        %1769 = vmatmul.mubr.f32.gmra.mrb[0].mxu0 %v1768
        %v1770 = vpop.f32.mrb[0].mxu0
        %v1771 = vadd.f32 %v1559, %v1770
        %v1772 = vpop.f32.mrb[0].mxu0
        %1773 = vmatprep.mubr.f32.mxu0 0.0
        %v1774 = vand.u32 %v720, 4294901760
        %1775 = vmatmul.mubr.f32.gmra.mrb[0].mxu0 %v1774
        %v1776 = vpop.f32.mrb[0].mxu0
        %v1777 = vadd.f32 %v1567, %v1776
        %v1778 = vpop.f32.mrb[0].mxu0
        %1779 = vmatprep.mubr.f32.mxu0 0.0
        %v1780 = vand.u32 %v723, 4294901760
        %1781 = vmatmul.mubr.f32.gmra.mrb[0].mxu0 %v1780
        %v1782 = vpop.f32.mrb[0].mxu0
        %v1783 = vadd.f32 %v1575, %v1782
        %v1784 = vpop.f32.mrb[0].mxu0
        %1785 = vmatprep.mubr.f32.mxu0 0.0
        %v1786 = vand.u32 %v726, 4294901760
        %1787 = vmatmul.mubr.f32.gmra.mrb[0].mxu0 %v1786
        %v1788 = vpop.f32.mrb[0].mxu0
        %v1789 = vadd.f32 %v1583, %v1788
        %v1790 = vpop.f32.mrb[0].mxu0
        %1791 = vmatprep.mubr.f32.mxu0 0.0
        %v1792 = vand.u32 %v729, 4294901760
        %1793 = vmatmul.mubr.f32.gmra.mrb[0].mxu0 %v1792
        %v1794 = vpop.f32.mrb[0].mxu0
        %v1795 = vadd.f32 %v1591, %v1794
        %v1796 = vpop.f32.mrb[0].mxu0
        %1797 = vmatprep.mubr.f32.mxu0 0.0
        %v1798 = vand.u32 %v732, 4294901760
        %1799 = vmatmul.mubr.f32.gmra.mrb[0].mxu0 %v1798
        %v1800 = vpop.f32.mrb[0].mxu0
        %v1801 = vadd.f32 %v1599, %v1800
        %v1802 = vpop.f32.mrb[0].mxu0
        %1803 = vmatprep.mubr.f32.mxu0 0.0
        %v1804 = vand.u32 %v735, 4294901760
        %1805 = vmatmul.mubr.f32.gmra.mrb[0].mxu0 %v1804
        %v1806 = vpop.f32.mrb[0].mxu0
        %v1807 = vadd.f32 %v1607, %v1806
        %v1808 = vpop.f32.mrb[0].mxu0
        %1809 = vdwg.mxu0
        %1810 = vmatprep.subr.mxu0 0.0
        %v1811 = vand.u32 %v522, 4294901760
        %1812 = vmatpush1.msra.mxu0 %v1811
        %1813 = vmatprep.subr.mxu0 0.0
        %v1814 = vand.u32 %v523, 4294901760
        %1815 = vmatpush1.msra.mxu0 %v1814
        %1816 = vmatprep.subr.mxu0 0.0
        %v1817 = vand.u32 %v524, 4294901760
        %1818 = vmatpush1.msra.mxu0 %v1817
        %1819 = vmatprep.subr.mxu0 0.0
        %v1820 = vand.u32 %v525, 4294901760
        %1821 = vmatpush1.msra.mxu0 %v1820
        %1822 = vmatprep.subr.mxu0 0.0
        %v1823 = vand.u32 %v526, 4294901760
        %1824 = vmatpush1.msra.mxu0 %v1823
        %1825 = vmatprep.subr.mxu0 0.0
        %v1826 = vand.u32 %v527, 4294901760
        %1827 = vmatpush1.msra.mxu0 %v1826
        %1828 = vmatprep.subr.mxu0 0.0
        %v1829 = vand.u32 %v528, 4294901760
        %1830 = vmatpush1.msra.mxu0 %v1829
        %1831 = vmatprep.subr.mxu0 0.0
        %v1832 = vand.u32 %v529, 4294901760
        %1833 = vmatpush1.msra.mxu0 %v1832
        %1834 = vmatprep.subr.mxu0 0.0
        %v1835 = vand.u32 %v530, 4294901760
        %1836 = vmatpush1.msra.mxu0 %v1835
        %1837 = vmatprep.subr.mxu0 0.0
        %v1838 = vand.u32 %v531, 4294901760
        %1839 = vmatpush1.msra.mxu0 %v1838
        %1840 = vmatprep.subr.mxu0 0.0
        %v1841 = vand.u32 %v532, 4294901760
        %1842 = vmatpush1.msra.mxu0 %v1841
        %1843 = vmatprep.subr.mxu0 0.0
        %v1844 = vand.u32 %v533, 4294901760
        %1845 = vmatpush1.msra.mxu0 %v1844
        %1846 = vmatprep.subr.mxu0 0.0
        %v1847 = vand.u32 %v534, 4294901760
        %1848 = vmatpush1.msra.mxu0 %v1847
        %1849 = vmatprep.subr.mxu0 0.0
        %1850 = vmatpush1.msra.mxu0 0.0
        %1851 = vmatprep.subr.mxu0 0.0
        %1852 = vmatpush1.msra.mxu0 0.0
        %1853 = vmatprep.subr.mxu0 0.0
        %1854 = vmatpush1.msra.mxu0 0.0
        %1855 = vmatprep.subr.mxu0 0.0
        %1856 = vmatpush1.msra.mxu0 0.0
        %1857 = vmatprep.subr.mxu0 0.0
        %1858 = vmatpush1.msra.mxu0 0.0
        %1859 = vmatprep.subr.mxu0 0.0
        %1860 = vmatpush1.msra.mxu0 0.0
        %1861 = vmatprep.subr.mxu0 0.0
        %1862 = vmatpush1.msra.mxu0 0.0
        %1863 = vmatprep.subr.mxu0 0.0
        %1864 = vmatpush1.msra.mxu0 0.0
        %1865 = vmatprep.subr.mxu0 0.0
        %1866 = vmatpush1.msra.mxu0 0.0
        %1867 = vmatprep.subr.mxu0 0.0
        %1868 = vmatpush1.msra.mxu0 0.0
        %1869 = vmatprep.subr.mxu0 0.0
        %1870 = vmatpush1.msra.mxu0 0.0
        %1871 = vmatprep.subr.mxu0 0.0
        %1872 = vmatpush1.msra.mxu0 0.0
        %1873 = vmatprep.subr.mxu0 0.0
        %1874 = vmatpush1.msra.mxu0 0.0
        %1875 = vmatprep.subr.mxu0 0.0
        %1876 = vmatpush1.msra.mxu0 0.0
        %1877 = vmatprep.subr.mxu0 0.0
        %1878 = vmatpush1.msra.mxu0 0.0
        %1879 = vmatprep.subr.mxu0 0.0
        %1880 = vmatpush1.msra.mxu0 0.0
        %1881 = vmatprep.subr.mxu0 0.0
        %1882 = vmatpush1.msra.mxu0 0.0
        %1883 = vmatprep.subr.mxu0 0.0
        %1884 = vmatpush1.msra.mxu0 0.0
        %1885 = vmatprep.subr.mxu0 0.0
        %1886 = vmatpush1.msra.mxu0 0.0
        %1887 = vmatprep.mubr.f32.mxu0 0.0
        %v1888 = vand.u32 %v690, 4294901760
        %1889 = vmatmul.mubr.f32.gmra.mrb[0].mxu0 %v1888
        %v1890 = vpop.f32.mrb[0].mxu0
        %v1891 = vadd.f32 %v1717, %v1890
        %v1892 = vpop.f32.mrb[0].mxu0
        %1893 = vmatprep.mubr.f32.mxu0 0.0
        %v1894 = vand.u32 %v693, 4294901760
        %1895 = vmatmul.mubr.f32.gmra.mrb[0].mxu0 %v1894
        %v1896 = vpop.f32.mrb[0].mxu0
        %v1897 = vadd.f32 %v1723, %v1896
        %v1898 = vpop.f32.mrb[0].mxu0
        %1899 = vmatprep.mubr.f32.mxu0 0.0
        %v1900 = vand.u32 %v696, 4294901760
        %1901 = vmatmul.mubr.f32.gmra.mrb[0].mxu0 %v1900
        %v1902 = vpop.f32.mrb[0].mxu0
        %v1903 = vadd.f32 %v1729, %v1902
        %v1904 = vpop.f32.mrb[0].mxu0
        %1905 = vmatprep.mubr.f32.mxu0 0.0
        %v1906 = vand.u32 %v699, 4294901760
        %1907 = vmatmul.mubr.f32.gmra.mrb[0].mxu0 %v1906
        %v1908 = vpop.f32.mrb[0].mxu0
        %v1909 = vadd.f32 %v1735, %v1908
        %v1910 = vpop.f32.mrb[0].mxu0
        %1911 = vmatprep.mubr.f32.mxu0 0.0
        %v1912 = vand.u32 %v702, 4294901760
        %1913 = vmatmul.mubr.f32.gmra.mrb[0].mxu0 %v1912
        %v1914 = vpop.f32.mrb[0].mxu0
        %v1915 = vadd.f32 %v1741, %v1914
        %v1916 = vpop.f32.mrb[0].mxu0
        %1917 = vmatprep.mubr.f32.mxu0 0.0
        %v1918 = vand.u32 %v705, 4294901760
        %1919 = vmatmul.mubr.f32.gmra.mrb[0].mxu0 %v1918
        %v1920 = vpop.f32.mrb[0].mxu0
        %v1921 = vadd.f32 %v1747, %v1920
        %v1922 = vpop.f32.mrb[0].mxu0
        %1923 = vmatprep.mubr.f32.mxu0 0.0
        %v1924 = vand.u32 %v708, 4294901760
        %1925 = vmatmul.mubr.f32.gmra.mrb[0].mxu0 %v1924
        %v1926 = vpop.f32.mrb[0].mxu0
        %v1927 = vadd.f32 %v1753, %v1926
        %v1928 = vpop.f32.mrb[0].mxu0
        %1929 = vmatprep.mubr.f32.mxu0 0.0
        %v1930 = vand.u32 %v711, 4294901760
        %1931 = vmatmul.mubr.f32.gmra.mrb[0].mxu0 %v1930
        %v1932 = vpop.f32.mrb[0].mxu0
        %v1933 = vadd.f32 %v1759, %v1932
        %v1934 = vpop.f32.mrb[0].mxu0
        %1935 = vmatprep.mubr.f32.mxu0 0.0
        %v1936 = vand.u32 %v714, 4294901760
        %1937 = vmatmul.mubr.f32.gmra.mrb[0].mxu0 %v1936
        %v1938 = vpop.f32.mrb[0].mxu0
        %v1939 = vadd.f32 %v1765, %v1938
        %v1940 = vpop.f32.mrb[0].mxu0
        %1941 = vmatprep.mubr.f32.mxu0 0.0
        %v1942 = vand.u32 %v717, 4294901760
        %1943 = vmatmul.mubr.f32.gmra.mrb[0].mxu0 %v1942
        %v1944 = vpop.f32.mrb[0].mxu0
        %v1945 = vadd.f32 %v1771, %v1944
        %v1946 = vpop.f32.mrb[0].mxu0
        %1947 = vmatprep.mubr.f32.mxu0 0.0
        %v1948 = vand.u32 %v720, 4294901760
        %1949 = vmatmul.mubr.f32.gmra.mrb[0].mxu0 %v1948
        %v1950 = vpop.f32.mrb[0].mxu0
        %v1951 = vadd.f32 %v1777, %v1950
        %v1952 = vpop.f32.mrb[0].mxu0
        %1953 = vmatprep.mubr.f32.mxu0 0.0
        %v1954 = vand.u32 %v723, 4294901760
        %1955 = vmatmul.mubr.f32.gmra.mrb[0].mxu0 %v1954
        %v1956 = vpop.f32.mrb[0].mxu0
        %v1957 = vadd.f32 %v1783, %v1956
        %v1958 = vpop.f32.mrb[0].mxu0
        %1959 = vmatprep.mubr.f32.mxu0 0.0
        %v1960 = vand.u32 %v726, 4294901760
        %1961 = vmatmul.mubr.f32.gmra.mrb[0].mxu0 %v1960
        %v1962 = vpop.f32.mrb[0].mxu0
        %v1963 = vadd.f32 %v1789, %v1962
        %v1964 = vpop.f32.mrb[0].mxu0
        %1965 = vmatprep.mubr.f32.mxu0 0.0
        %v1966 = vand.u32 %v729, 4294901760
        %1967 = vmatmul.mubr.f32.gmra.mrb[0].mxu0 %v1966
        %v1968 = vpop.f32.mrb[0].mxu0
        %v1969 = vadd.f32 %v1795, %v1968
        %v1970 = vpop.f32.mrb[0].mxu0
        %1971 = vmatprep.mubr.f32.mxu0 0.0
        %v1972 = vand.u32 %v732, 4294901760
        %1973 = vmatmul.mubr.f32.gmra.mrb[0].mxu0 %v1972
        %v1974 = vpop.f32.mrb[0].mxu0
        %v1975 = vadd.f32 %v1801, %v1974
        %v1976 = vpop.f32.mrb[0].mxu0
        %1977 = vmatprep.mubr.f32.mxu0 0.0
        %v1978 = vand.u32 %v735, 4294901760
        %1979 = vmatmul.mubr.f32.gmra.mrb[0].mxu0 %v1978
        %v1980 = vpop.f32.mrb[0].mxu0
        %v1981 = vadd.f32 %v1807, %v1980
        %v1982 = vpop.f32.mrb[0].mxu0
        %1983 = vdwg.mxu0
        %v1984 = vadd.f32 %v1891, %v672
        %v1985 = vadd.f32 %v1897, %v673
        %v1986 = vadd.f32 %v1903, %v674
        %v1987 = vadd.f32 %v1909, %v675
        %v1988 = vadd.f32 %v1915, %v676
        %v1989 = vadd.f32 %v1921, %v677
        %v1990 = vadd.f32 %v1927, %v678
        %v1991 = vadd.f32 %v1933, %v679
        %v1992 = vadd.f32 %v1939, %v680
        %v1993 = vadd.f32 %v1945, %v681
        %v1994 = vadd.f32 %v1951, %v682
        %v1995 = vadd.f32 %v1957, %v683
        %v1996 = vadd.f32 %v1963, %v684
        %v1997 = vadd.f32 %v1969, %v685
        %v1998 = vadd.f32 %v1975, %v686
        %v1999 = vadd.f32 %v1981, %v687
        %v2000 = vld [vmem:[%s5] sm:$0x1]
        %v2001 = vld [vmem:[%s6] sm:$0x1]
        %2002 = vadd.xlane.f32.xlu0 %v1984
        %v2003 = vpop.xlane.xlu0 %2002
        %2004 = vadd.xlane.f32.xlu0 %v1985
        %v2005 = vpop.xlane.xlu0 %2004
        %2006 = vadd.xlane.f32.xlu0 %v1986
        %v2007 = vpop.xlane.xlu0 %2006
        %2008 = vadd.xlane.f32.xlu0 %v1987
        %v2009 = vpop.xlane.xlu0 %2008
        %2010 = vadd.xlane.f32.xlu0 %v1988
        %v2011 = vpop.xlane.xlu0 %2010
        %2012 = vadd.xlane.f32.xlu0 %v1989
        %v2013 = vpop.xlane.xlu0 %2012
        %2014 = vadd.xlane.f32.xlu0 %v1990
        %v2015 = vpop.xlane.xlu0 %2014
        %2016 = vadd.xlane.f32.xlu0 %v1991
        %v2017 = vpop.xlane.xlu0 %2016
        %2018 = vadd.xlane.f32.xlu0 %v1992
        %v2019 = vpop.xlane.xlu0 %2018
        %2020 = vadd.xlane.f32.xlu0 %v1993
        %v2021 = vpop.xlane.xlu0 %2020
        %2022 = vadd.xlane.f32.xlu0 %v1994
        %v2023 = vpop.xlane.xlu0 %2022
        %2024 = vadd.xlane.f32.xlu0 %v1995
        %v2025 = vpop.xlane.xlu0 %2024
        %2026 = vadd.xlane.f32.xlu0 %v1996
        %v2027 = vpop.xlane.xlu0 %2026
        %2028 = vadd.xlane.f32.xlu0 %v1997
        %v2029 = vpop.xlane.xlu0 %2028
        %2030 = vadd.xlane.f32.xlu0 %v1998
        %v2031 = vpop.xlane.xlu0 %2030
        %2032 = vadd.xlane.f32.xlu0 %v1999
        %v2033 = vpop.xlane.xlu0 %2032
        %v2034 = vmul.f32 %v1984, %v1984
        %v2035 = vmul.f32 %v1985, %v1985
        %v2036 = vmul.f32 %v1986, %v1986
        %v2037 = vmul.f32 %v1987, %v1987
        %v2038 = vmul.f32 %v1988, %v1988
        %v2039 = vmul.f32 %v1989, %v1989
        %v2040 = vmul.f32 %v1990, %v1990
        %v2041 = vmul.f32 %v1991, %v1991
        %v2042 = vmul.f32 %v1992, %v1992
        %v2043 = vmul.f32 %v1993, %v1993
        %v2044 = vmul.f32 %v1994, %v1994
        %v2045 = vmul.f32 %v1995, %v1995
        %v2046 = vmul.f32 %v1996, %v1996
        %v2047 = vmul.f32 %v1997, %v1997
        %v2048 = vmul.f32 %v1998, %v1998
        %v2049 = vmul.f32 %v1999, %v1999
        %2050 = vadd.xlane.f32.xlu0 %v2034
        %v2051 = vpop.xlane.xlu0 %2050
        %2052 = vadd.xlane.f32.xlu0 %v2035
        %v2053 = vpop.xlane.xlu0 %2052
        %2054 = vadd.xlane.f32.xlu0 %v2036
        %v2055 = vpop.xlane.xlu0 %2054
        %2056 = vadd.xlane.f32.xlu0 %v2037
        %v2057 = vpop.xlane.xlu0 %2056
        %2058 = vadd.xlane.f32.xlu0 %v2038
        %v2059 = vpop.xlane.xlu0 %2058
        %2060 = vadd.xlane.f32.xlu0 %v2039
        %v2061 = vpop.xlane.xlu0 %2060
        %2062 = vadd.xlane.f32.xlu0 %v2040
        %v2063 = vpop.xlane.xlu0 %2062
        %2064 = vadd.xlane.f32.xlu0 %v2041
        %v2065 = vpop.xlane.xlu0 %2064
        %2066 = vadd.xlane.f32.xlu0 %v2042
        %v2067 = vpop.xlane.xlu0 %2066
        %2068 = vadd.xlane.f32.xlu0 %v2043
        %v2069 = vpop.xlane.xlu0 %2068
        %2070 = vadd.xlane.f32.xlu0 %v2044
        %v2071 = vpop.xlane.xlu0 %2070
        %2072 = vadd.xlane.f32.xlu0 %v2045
        %v2073 = vpop.xlane.xlu0 %2072
        %2074 = vadd.xlane.f32.xlu0 %v2046
        %v2075 = vpop.xlane.xlu0 %2074
        %2076 = vadd.xlane.f32.xlu0 %v2047
        %v2077 = vpop.xlane.xlu0 %2076
        %2078 = vadd.xlane.f32.xlu0 %v2048
        %v2079 = vpop.xlane.xlu0 %2078
        %2080 = vadd.xlane.f32.xlu0 %v2049
        %v2081 = vpop.xlane.xlu0 %2080
        %v2082 = vmul.f32 %v2003, 0.0078125
        %v2083 = vmul.f32 %v2005, 0.0078125
        %v2084 = vmul.f32 %v2007, 0.0078125
        %v2085 = vmul.f32 %v2009, 0.0078125
        %v2086 = vmul.f32 %v2011, 0.0078125
        %v2087 = vmul.f32 %v2013, 0.0078125
        %v2088 = vmul.f32 %v2015, 0.0078125
        %v2089 = vmul.f32 %v2017, 0.0078125
        %v2090 = vmul.f32 %v2019, 0.0078125
        %v2091 = vmul.f32 %v2021, 0.0078125
        %v2092 = vmul.f32 %v2023, 0.0078125
        %v2093 = vmul.f32 %v2025, 0.0078125
        %v2094 = vmul.f32 %v2027, 0.0078125
        %v2095 = vmul.f32 %v2029, 0.0078125
        %v2096 = vmul.f32 %v2031, 0.0078125
        %v2097 = vmul.f32 %v2033, 0.0078125
        %v2098 = vmul.f32 %v2051, 0.0078125
        %v2099 = vmul.f32 %v2053, 0.0078125
        %v2100 = vmul.f32 %v2055, 0.0078125
        %v2101 = vmul.f32 %v2057, 0.0078125
        %v2102 = vmul.f32 %v2059, 0.0078125
        %v2103 = vmul.f32 %v2061, 0.0078125
        %v2104 = vmul.f32 %v2063, 0.0078125
        %v2105 = vmul.f32 %v2065, 0.0078125
        %v2106 = vmul.f32 %v2067, 0.0078125
        %v2107 = vmul.f32 %v2069, 0.0078125
        %v2108 = vmul.f32 %v2071, 0.0078125
        %v2109 = vmul.f32 %v2073, 0.0078125
        %v2110 = vmul.f32 %v2075, 0.0078125
        %v2111 = vmul.f32 %v2077, 0.0078125
        %v2112 = vmul.f32 %v2079, 0.0078125
        %v2113 = vmul.f32 %v2081, 0.0078125
        %v2114 = vmul.f32 %v2082, %v2082
        %v2115 = vmul.f32 %v2083, %v2083
        %v2116 = vmul.f32 %v2084, %v2084
        %v2117 = vmul.f32 %v2085, %v2085
        %v2118 = vmul.f32 %v2086, %v2086
        %v2119 = vmul.f32 %v2087, %v2087
        %v2120 = vmul.f32 %v2088, %v2088
        %v2121 = vmul.f32 %v2089, %v2089
        %v2122 = vmul.f32 %v2090, %v2090
        %v2123 = vmul.f32 %v2091, %v2091
        %v2124 = vmul.f32 %v2092, %v2092
        %v2125 = vmul.f32 %v2093, %v2093
        %v2126 = vmul.f32 %v2094, %v2094
        %v2127 = vmul.f32 %v2095, %v2095
        %v2128 = vmul.f32 %v2096, %v2096
        %v2129 = vmul.f32 %v2097, %v2097
        %v2130 = vsub.f32 %v2098, %v2114
        %v2131 = vsub.f32 %v2099, %v2115
        %v2132 = vsub.f32 %v2100, %v2116
        %v2133 = vsub.f32 %v2101, %v2117
        %v2134 = vsub.f32 %v2102, %v2118
        %v2135 = vsub.f32 %v2103, %v2119
        %v2136 = vsub.f32 %v2104, %v2120
        %v2137 = vsub.f32 %v2105, %v2121
        %v2138 = vsub.f32 %v2106, %v2122
        %v2139 = vsub.f32 %v2107, %v2123
        %v2140 = vsub.f32 %v2108, %v2124
        %v2141 = vsub.f32 %v2109, %v2125
        %v2142 = vsub.f32 %v2110, %v2126
        %v2143 = vsub.f32 %v2111, %v2127
        %v2144 = vsub.f32 %v2112, %v2128
        %v2145 = vsub.f32 %v2113, %v2129
        %v2146 = vmax.f32 %v2130, 0.0
        %v2147 = vmax.f32 %v2131, 0.0
        %v2148 = vmax.f32 %v2132, 0.0
        %v2149 = vmax.f32 %v2133, 0.0
        %v2150 = vmax.f32 %v2134, 0.0
        %v2151 = vmax.f32 %v2135, 0.0
        %v2152 = vmax.f32 %v2136, 0.0
        %v2153 = vmax.f32 %v2137, 0.0
        %v2154 = vmax.f32 %v2138, 0.0
        %v2155 = vmax.f32 %v2139, 0.0
        %v2156 = vmax.f32 %v2140, 0.0
        %v2157 = vmax.f32 %v2141, 0.0
        %v2158 = vmax.f32 %v2142, 0.0
        %v2159 = vmax.f32 %v2143, 0.0
        %v2160 = vmax.f32 %v2144, 0.0
        %v2161 = vmax.f32 %v2145, 0.0
        %v2162 = vsub.f32 %v1984, %v2082
        %v2163 = vsub.f32 %v1985, %v2083
        %v2164 = vsub.f32 %v1986, %v2084
        %v2165 = vsub.f32 %v1987, %v2085
        %v2166 = vsub.f32 %v1988, %v2086
        %v2167 = vsub.f32 %v1989, %v2087
        %v2168 = vsub.f32 %v1990, %v2088
        %v2169 = vsub.f32 %v1991, %v2089
        %v2170 = vsub.f32 %v1992, %v2090
        %v2171 = vsub.f32 %v1993, %v2091
        %v2172 = vsub.f32 %v1994, %v2092
        %v2173 = vsub.f32 %v1995, %v2093
        %v2174 = vsub.f32 %v1996, %v2094
        %v2175 = vsub.f32 %v1997, %v2095
        %v2176 = vsub.f32 %v1998, %v2096
        %v2177 = vsub.f32 %v1999, %v2097
        %v2178 = vadd.f32 %v2146, 1e-12
        %v2179 = vadd.f32 %v2147, 1e-12
        %v2180 = vadd.f32 %v2148, 1e-12
        %v2181 = vadd.f32 %v2149, 1e-12
        %v2182 = vadd.f32 %v2150, 1e-12
        %v2183 = vadd.f32 %v2151, 1e-12
        %v2184 = vadd.f32 %v2152, 1e-12
        %v2185 = vadd.f32 %v2153, 1e-12
        %v2186 = vadd.f32 %v2154, 1e-12
        %v2187 = vadd.f32 %v2155, 1e-12
        %v2188 = vadd.f32 %v2156, 1e-12
        %v2189 = vadd.f32 %v2157, 1e-12
        %v2190 = vadd.f32 %v2158, 1e-12
        %v2191 = vadd.f32 %v2159, 1e-12
        %v2192 = vadd.f32 %v2160, 1e-12
        %v2193 = vadd.f32 %v2161, 1e-12
        %v2194 = vrsqrt.pop %v2178
        %v2195 = vrsqrt.pop %v2179
        %v2196 = vrsqrt.pop %v2180
        %v2197 = vrsqrt.pop %v2181
        %v2198 = vrsqrt.pop %v2182
        %v2199 = vrsqrt.pop %v2183
        %v2200 = vrsqrt.pop %v2184
        %v2201 = vrsqrt.pop %v2185
        %v2202 = vrsqrt.pop %v2186
        %v2203 = vrsqrt.pop %v2187
        %v2204 = vrsqrt.pop %v2188
        %v2205 = vrsqrt.pop %v2189
        %v2206 = vrsqrt.pop %v2190
        %v2207 = vrsqrt.pop %v2191
        %v2208 = vrsqrt.pop %v2192
        %v2209 = vrsqrt.pop %v2193
        %v2210 = vmul.f32 %v2162, %v2194
        %v2211 = vmul.f32 %v2163, %v2195
        %v2212 = vmul.f32 %v2164, %v2196
        %v2213 = vmul.f32 %v2165, %v2197
        %v2214 = vmul.f32 %v2166, %v2198
        %v2215 = vmul.f32 %v2167, %v2199
        %v2216 = vmul.f32 %v2168, %v2200
        %v2217 = vmul.f32 %v2169, %v2201
        %v2218 = vmul.f32 %v2170, %v2202
        %v2219 = vmul.f32 %v2171, %v2203
        %v2220 = vmul.f32 %v2172, %v2204
        %v2221 = vmul.f32 %v2173, %v2205
        %v2222 = vmul.f32 %v2174, %v2206
        %v2223 = vmul.f32 %v2175, %v2207
        %v2224 = vmul.f32 %v2176, %v2208
        %v2225 = vmul.f32 %v2177, %v2209
        %v2227 = vlaneseq
        %v2228 = vshrl.u32 %v2227, 7
        %v2229 = vsub.s32 0, %v2228
        %v2230 = vrot.slane %v2000, %v2229
        %v2232 = vmul.f32 %v2210, %v2230
        %v2233 = vmul.f32 %v2211, %v2230
        %v2234 = vmul.f32 %v2212, %v2230
        %v2235 = vmul.f32 %v2213, %v2230
        %v2236 = vmul.f32 %v2214, %v2230
        %v2237 = vmul.f32 %v2215, %v2230
        %v2238 = vmul.f32 %v2216, %v2230
        %v2239 = vmul.f32 %v2217, %v2230
        %v2240 = vmul.f32 %v2218, %v2230
        %v2241 = vmul.f32 %v2219, %v2230
        %v2242 = vmul.f32 %v2220, %v2230
        %v2243 = vmul.f32 %v2221, %v2230
        %v2244 = vmul.f32 %v2222, %v2230
        %v2245 = vmul.f32 %v2223, %v2230
        %v2246 = vmul.f32 %v2224, %v2230
        %v2247 = vmul.f32 %v2225, %v2230
        %v2249 = vlaneseq
        %v2250 = vshrl.u32 %v2249, 7
        %v2251 = vsub.s32 0, %v2250
        %v2252 = vrot.slane %v2001, %v2251
        %v2254 = vadd.f32 %v2232, %v2252
        %v2255 = vadd.f32 %v2233, %v2252
        %v2256 = vadd.f32 %v2234, %v2252
        %v2257 = vadd.f32 %v2235, %v2252
        %v2258 = vadd.f32 %v2236, %v2252
        %v2259 = vadd.f32 %v2237, %v2252
        %v2260 = vadd.f32 %v2238, %v2252
        %v2261 = vadd.f32 %v2239, %v2252
        %v2262 = vadd.f32 %v2240, %v2252
        %v2263 = vadd.f32 %v2241, %v2252
        %v2264 = vadd.f32 %v2242, %v2252
        %v2265 = vadd.f32 %v2243, %v2252
        %v2266 = vadd.f32 %v2244, %v2252
        %v2267 = vadd.f32 %v2245, %v2252
        %v2268 = vadd.f32 %v2246, %v2252
        %v2269 = vadd.f32 %v2247, %v2252
        %2270 = vst [vmem:[%s364] sm:$0xff] %v2254
        %2271 = vst [vmem:[%s364 + $0x8] sm:$0xff] %v2255
        %2272 = vst [vmem:[%s364 + $0x10] sm:$0xff] %v2256
        %2273 = vst [vmem:[%s364 + $0x18] sm:$0xff] %v2257
        %2274 = vst [vmem:[%s364 + $0x20] sm:$0xff] %v2258
        %2275 = vst [vmem:[%s364 + $0x28] sm:$0xff] %v2259
        %2276 = vst [vmem:[%s364 + $0x30] sm:$0xff] %v2260
        %2277 = vst [vmem:[%s364 + $0x38] sm:$0xff] %v2261
        %2278 = vst [vmem:[%s364 + $0x40] sm:$0xff] %v2262
        %2279 = vst [vmem:[%s364 + $0x48] sm:$0xff] %v2263
        %2280 = vst [vmem:[%s364 + $0x50] sm:$0xff] %v2264
        %2281 = vst [vmem:[%s364 + $0x58] sm:$0xff] %v2265
        %2282 = vst [vmem:[%s364 + $0x60] sm:$0xff] %v2266
        %2283 = vst [vmem:[%s364 + $0x68] sm:$0xff] %v2267
        %2284 = vst [vmem:[%s364 + $0x70] sm:$0xff] %v2268
        %2285 = vst [vmem:[%s364 + $0x78] sm:$0xff] %v2269
        %s2286 = sand.u32 %s215, 1
        %s2287 = scalar_lea.sflag [#allocation3], %s2286
        %s2288 = sand.u32 %s215, 1
        %s2289 = smul.addr %s2288, 128
        %s2290 = scalar_lea.vmem [#allocation2], %s2289
        // Predicated region
        $region49: #{tpu_custom_call.1} parent=47 // pred_check
          %p2291 = pneg %p225
        $region50: #{tpu_custom_call.1} parent=47 // pred_check_branch
          %2293 = sbr.rel (%p2291) target = $region52
        $region51: #{tpu_custom_call.1} parent=47 // pred_region
          %s2294 = smul.u32 16, %s21
          %s2296 = ssub.s32 2048, 2048
          %2297 = vsyncadd %s2287, %s2296
          %s2298 = smul.addr %s2294, 128
          %s2299 = scalar_lea.hbm %s7, %s2298
          %s2300 = sshll.u32 %s2290, 4
          %s2301 = int_to_ptr.vmem [resolvable:$true] %s2300
          %2306 = dma.vmem_to_hbm [thread:$0]  %s2301, 2048, %s2299, %s2287, 128, 128, 8
        $region52: #{tpu_custom_call.1} parent=47 // pred_fallthru
          _
      $region48: #{tpu_custom_call.1} parent=5 // pred_fallthru
        _
      %p2307 = scmp.le.s32.totalorder 2, %s16
      // Predicated region
      $region53: #{tpu_custom_call.1} parent=5 // pred_check
        %p2308 = pneg %p2307
      $region54: #{tpu_custom_call.1} parent=5 // pred_check_branch
        %2310 = sbr.rel (%p2308) target = $region56
      $region55: #{tpu_custom_call.1} parent=5 // pred_region
        %s2311 = ssub.s32 %s16, 2
        // Predicated region
        $region57: #{tpu_custom_call.1} parent=55 // pred_check
          %p2312 = pneg %p231
        $region58: #{tpu_custom_call.1} parent=55 // pred_check_branch
          %2314 = sbr.rel (%p2312) target = $region60
        $region59: #{tpu_custom_call.1} parent=55 // pred_region
          %s2315 = sand.u32 %s216, 1
          %s2316 = scalar_lea.sflag [#allocation3], %s2315
          %s2317 = sand.u32 %s216, 1
          %s2318 = smul.addr %s2317, 128
          %s2319 = scalar_lea.vmem [#allocation2], %s2318
          %2320 = dma.done %s2316, 2048
        $region60: #{tpu_custom_call.1} parent=55 // pred_fallthru
          _
      $region56: #{tpu_custom_call.1} parent=5 // pred_fallthru
        _
    $region6: #{tpu_custom_call.1} parent=1 // loop_footer
      %s20 = sadd.s32 1, %s16
    $region7: #{tpu_custom_call.1} parent=1 // loop_footer_branch
      %15 = sbr.rel target = $region3
    $region8: #{tpu_custom_call.1} parent=1 // loop_exit
      _
    %2321 = vsyncpa [#allocation3], 1
    %s2322 = scalar_lea.sflag [#allocation3], 1
    %2323 = vsyncpa %s2322, 1

</llo_original>
